<compile_context>
chip_gen: v6e
topology: v6e:2x2x1
jax: 0.10.0
libtpu: 0.0.40
codegen_flags: <defaults>
</compile_context>

<pallas_src>
import math
import functools

import jax
import jax.numpy as jnp
from jax.experimental import pallas as pl
from jax.experimental.pallas import tpu as pltpu


# ----------------------------------------------------------------------------
# Kernel 1: AdaRMSNorm + fused QKV projection + per-head L2 norm/scale + RoPE.
# ----------------------------------------------------------------------------
def _qkv_prep_kernel(x_ref, mod_ref, cos_ref, sin_ref, w_ref, hsum_ref,
                     hexp_ref, scale_ref, q_out_ref, k_out_ref, v_out_ref,
                     *, C, eps):
    f32 = jnp.float32
    x = x_ref[0].astype(f32)                                          # (ts, C)

    # AdaRMSNorm: RMSNorm (no learned scale) * (1 + Linear(emb)); "mod" is
    # precomputed in the wrapper (emb @ proj_w) and arrives as a (1, C) row.
    ms = jnp.mean(x * x, axis=-1, keepdims=True)
    xn = x * jax.lax.rsqrt(ms + eps)
    h = (xn * (1.0 + mod_ref[0].astype(f32))).astype(jnp.bfloat16)    # (ts, C)

    # One fused (ts, C) x (C, 5C) bf16 matmul -> [q | q_swapped | k | k_swapped | v].
    # The *_swapped columns have each head's two RoPE halves pre-swapped in the
    # wrapper, so the "rotate-half" partner comes straight out of the MXU.
    qkv = jnp.dot(h, w_ref[...], preferred_element_type=f32)          # (ts, 5C)
    q, qs = qkv[:, :C], qkv[:, C:2 * C]
    k, ks = qkv[:, 2 * C:3 * C], qkv[:, 3 * C:4 * C]
    v = qkv[:, 4 * C:]

    # Per-head sum-of-squares with a skinny (C -> N) one-hot matmul, then
    # scale / max(||.||, eps) on (ts, N), then broadcast back to (ts, C) with
    # an (N -> C) one-hot matmul.  (The per-head attention scale is folded in.)
    q_ss = jnp.dot(q * q, hsum_ref[...], preferred_element_type=f32)  # (ts, N)
    k_ss = jnp.dot(k * k, hsum_ref[...], preferred_element_type=f32)
    scale = scale_ref[...]                                            # (1, N)
    q_inv = jnp.dot(scale / jnp.maximum(jnp.sqrt(q_ss), eps), hexp_ref[...],
                    preferred_element_type=f32)                       # (ts, C)
    k_inv = jnp.dot(scale / jnp.maximum(jnp.sqrt(k_ss), eps), hexp_ref[...],
                    preferred_element_type=f32)

    # Axial RoPE: cos duplicated per half, sin carries the -/+ signs, so the
    # rotation is two lane-dense FMAs; the per-head norm*scale commutes with
    # the rotation and is applied afterwards (one multiply instead of two).
    cos = cos_ref[0].astype(f32)
    sin = sin_ref[0].astype(f32)
    q_out_ref[0] = ((q * cos + qs * sin) * q_inv).astype(q_out_ref.dtype)
    k_out_ref[0] = ((k * cos + ks * sin) * k_inv).astype(k_out_ref.dtype)
    v_out_ref[0] = v.astype(v_out_ref.dtype)


# ----------------------------------------------------------------------------
# Kernel 2: flash attention (online softmax over kv tiles) + out-proj+residual.
# ----------------------------------------------------------------------------
def _flash_attn_kernel(q_ref, k_ref, v_ref, x_ref, out_w_ref, hexp_ref, o_ref,
                       m_scr, l_scr, acc_scr, *, num_heads, head_dim):
    ki = pl.program_id(2)
    D = head_dim
    f32 = jnp.float32

    @pl.when(ki == 0)
    def _():
        m_scr[...] = jnp.full(m_scr.shape, -jnp.inf, dtype=m_scr.dtype)
        l_scr[...] = jnp.zeros(l_scr.shape, dtype=l_scr.dtype)
        acc_scr[...] = jnp.zeros(acc_scr.shape, dtype=acc_scr.dtype)

    q = q_ref[0]                                                      # (tq, C) bf16
    k = k_ref[0]                                                      # (tk, C) bf16
    v = v_ref[0]                                                      # (tk, C) bf16

    m_prev = m_scr[...]                                               # (tq, N)
    l_prev = l_scr[...]                                               # (tq, N)

    # Per-head matmuls (contraction dim = head_dim) stay a short static loop;
    # only tiny (tq,1)/(tq,D) values survive an iteration - the (tq,tk) s/p
    # temporaries die inside it.  Stats/acc are updated ONCE per kv step below.
    m_cols, l_cols, a_cols, pv_cols = [], [], [], []
    for n in range(num_heads):
        sl = slice(n * D, (n + 1) * D)
        # scaled_dot_product_attention with scale=1.0 (matches the module)
        s = jax.lax.dot_general(q[:, sl], k[:, sl], (((1,), (1,)), ((), ())),
                                preferred_element_type=f32)           # (tq, tk)
        m_p = m_prev[:, n:n + 1]
        m_n = jnp.maximum(m_p, jnp.max(s, axis=-1, keepdims=True))
        a_n = jnp.exp(m_p - m_n)
        p = jnp.exp(s - m_n)                                          # f32 exp (v5e-safe)
        l_n = a_n * l_prev[:, n:n + 1] + jnp.sum(p, axis=-1, keepdims=True)
        pv = jnp.dot(p.astype(jnp.bfloat16), v[:, sl],
                     preferred_element_type=f32)                      # (tq, D)
        m_cols.append(m_n); l_cols.append(l_n)
        a_cols.append(a_n); pv_cols.append(pv)

    # Lane-packed stat writes (once per kv step).
    m_scr[...] = jnp.concatenate(m_cols, axis=-1)                     # (tq, N)
    l_scr[...] = jnp.concatenate(l_cols, axis=-1)                     # (tq, N)

    # One lane-dense FMA on the whole (tq, C) accumulator: alpha expanded to
    # (tq, C) via a tiny one-hot matmul, P@V results lane-concatenated.
    alpha = jnp.concatenate(a_cols, axis=-1)                          # (tq, N)
    alpha_full = jnp.dot(alpha, hexp_ref[...],
                         preferred_element_type=f32)                  # (tq, C)
    pv_full = jnp.concatenate(pv_cols, axis=-1)                       # (tq, C)
    acc_scr[...] = alpha_full * acc_scr[...] + pv_full

    @pl.when(ki == pl.num_programs(2) - 1)
    def _():
        inv_l = pl.reciprocal(l_scr[...], approx=True)                # (tq, N)
        inv_full = jnp.dot(inv_l, hexp_ref[...],
                           preferred_element_type=f32)                # (tq, C)
        o = (acc_scr[...] * inv_full).astype(jnp.bfloat16)            # (tq, C)
        # TODO(synk): nn.Dropout(p=0.0) is an identity at these settings and is omitted.
        res = jnp.dot(o, out_w_ref[...], preferred_element_type=f32)  # (tq, C)
        # Residual: x is only read here (short live range, already in VMEM).
        o_ref[0] = (x_ref[0].astype(f32) + res).astype(o_ref.dtype)


# ----------------------------------------------------------------------------
# Plain-JAX glue.
# ----------------------------------------------------------------------------
def _setup_freqs(n, max_h):
    # torch.linspace(log(1), log(max_h), n).exp().round()
    return jnp.round(jnp.exp(jnp.linspace(0.0, math.log(max_h), n)))


def _rope_theta(coords, num_heads, head_dim, rope_max_harmonics):
    D = head_dim
    fh = _setup_freqs(num_heads * D // 4, rope_max_harmonics[0]).reshape(D // 4, num_heads).T
    fw = _setup_freqs(num_heads * D // 4, rope_max_harmonics[1]).reshape(D // 4, num_heads).T
    cc = jnp.transpose(coords, (0, 2, 3, 1))                          # (B,H,W,2)
    radian_h = cc[..., None, 0:1] * fh                                # (B,H,W,N,D/4)
    radian_w = cc[..., None, 1:2] * fw
    return jnp.concatenate([radian_h, radian_w], axis=-1)             # (B,H,W,N,D/2)


def _pick_tile(n, target):
    # Largest divisor of n that is <= target AND a multiple of 8; otherwise
    # fall back to the full extent (a full-dim block is always legal).
    t = min(n, target)
    while t >= 8:
        if n % t == 0 and t % 8 == 0:
            return t
        t -= 1
    return n


def global_self_attention_block(x, coords, emb, params, *, num_heads,
                                rope_max_harmonics=(1, 1), eps=1e-6,
                                q_block=None, kv_block=None, prep_block=None):
    B, H, W, C = x.shape
    N = num_heads
    D = C // N
    Dh = D // 2
    S = H * W
    bf16 = jnp.bfloat16

    # ---- chip-adaptive VMEM budget / tile targets -------------------------
    try:
        info = pltpu.get_tpu_info()
        vmem_cap = int(getattr(info, "vmem_capacity_bytes", 64 * 1024 * 1024))
    except Exception:
        vmem_cap = 64 * 1024 * 1024
    if vmem_cap >= 100 * 1024 * 1024:          # v5e / v6e: 128 MiB physical VMEM
        vmem_limit = 96 * 1024 * 1024
        tile_target = 512
    else:                                       # v7x: 64 MiB physical VMEM
        vmem_limit = 48 * 1024 * 1024
        tile_target = 256
    q_block = tile_target if q_block is None else q_block
    kv_block = tile_target if kv_block is None else kv_block
    prep_block = tile_target if prep_block is None else prep_block

    # ---- cheap O(S*C) precompute: RoPE tables, scales, weight packing ------
    theta = _rope_theta(coords, N, D, rope_max_harmonics)
    theta = theta.reshape(B, S, N, Dh).astype(jnp.float32)
    ct, st = jnp.cos(theta), jnp.sin(theta)
    cos_full = jnp.concatenate([ct, ct], axis=-1).reshape(B, S, C).astype(bf16)
    sin_full = jnp.concatenate([-st, st], axis=-1).reshape(B, S, C).astype(bf16)

    # self.scale.clamp(max=log(100)).exp().sqrt(), one value per head
    attn_scale = jnp.sqrt(jnp.exp(jnp.minimum(params["scale"], math.log(100.0))))
    scale_row = attn_scale.reshape(1, N).astype(jnp.float32)          # (1, N)

    qkv_w = params["qkv_w"].astype(jnp.float32)                       # (C, 3C), T-major
    qw, kw, vw = qkv_w[:, :C], qkv_w[:, C:2 * C], qkv_w[:, 2 * C:]
    heads = jnp.arange(C) // D
    within = jnp.arange(C) % D
    swap_idx = heads * D + (within + Dh) % D                          # swap RoPE halves per head
    w_all = jnp.concatenate(
        [qw, qw[:, swap_idx], kw, kw[:, swap_idx], vw], axis=1).astype(bf16)   # (C, 5C)

    head_sum = (heads[:, None] == jnp.arange(N)[None, :]).astype(jnp.float32)  # (C, N)
    head_exp = (jnp.arange(N)[:, None] == heads[None, :]).astype(jnp.float32)  # (N, C)

    out_w = params["out_w"].astype(bf16)
    # AdaRMSNorm modulation precomputed outside the kernel (tiny (B, C)).
    mod = (emb.astype(jnp.float32) @ params["proj_w"].astype(jnp.float32)).reshape(B, 1, C)

    x_flat = x.reshape(B, S, C)

    ts = _pick_tile(S, prep_block)
    tq = _pick_tile(S, q_block)
    tk = _pick_tile(S, kv_block)

    # ---- pass 1: fused norm + QKV + L2-scale + RoPE -------------------------
    q_rot, k_rot, v_all = pl.pallas_call(
        functools.partial(_qkv_prep_kernel, C=C, eps=eps),
        out_shape=(jax.ShapeDtypeStruct((B, S, C), bf16),
                   jax.ShapeDtypeStruct((B, S, C), bf16),
                   jax.ShapeDtypeStruct((B, S, C), bf16)),
        grid_spec=pltpu.PrefetchScalarGridSpec(
            num_scalar_prefetch=0,
            grid=(B, S // ts),
            in_specs=[
                pl.BlockSpec((1, ts, C), lambda b, s: (b, s, 0)),      # x
                pl.BlockSpec((1, 1, C), lambda b, s: (b, 0, 0)),       # mod = emb @ proj_w
                pl.BlockSpec((1, ts, C), lambda b, s: (b, s, 0)),      # cos table (bf16)
                pl.BlockSpec((1, ts, C), lambda b, s: (b, s, 0)),      # signed sin table (bf16)
                pl.BlockSpec((C, 5 * C), lambda b, s: (0, 0)),         # packed QKV(+swapped) W^T
                pl.BlockSpec((C, N), lambda b, s: (0, 0)),             # head one-hot (reduce)
                pl.BlockSpec((N, C), lambda b, s: (0, 0)),             # head one-hot (expand)
                pl.BlockSpec((1, N), lambda b, s: (0, 0)),             # per-head attn scale
            ],
            out_specs=[
                pl.BlockSpec((1, ts, C), lambda b, s: (b, s, 0)),
                pl.BlockSpec((1, ts, C), lambda b, s: (b, s, 0)),
                pl.BlockSpec((1, ts, C), lambda b, s: (b, s, 0)),
            ],
        ),
        compiler_params=pltpu.CompilerParams(
            dimension_semantics=("parallel", "parallel"),
            vmem_limit_bytes=vmem_limit),
    )(x_flat, mod, cos_full, sin_full, w_all, head_sum, head_exp, scale_row)

    # ---- pass 2: flash attention + out projection + residual ----------------
    out = pl.pallas_call(
        functools.partial(_flash_attn_kernel, num_heads=N, head_dim=D),
        out_shape=jax.ShapeDtypeStruct((B, S, C), x.dtype),
        grid_spec=pltpu.PrefetchScalarGridSpec(
            num_scalar_prefetch=0,
            grid=(B, S // tq, S // tk),
            in_specs=[
                pl.BlockSpec((1, tq, C), lambda b, qi, ki: (b, qi, 0)),  # q
                pl.BlockSpec((1, tk, C), lambda b, qi, ki: (b, ki, 0)),  # k
                pl.BlockSpec((1, tk, C), lambda b, qi, ki: (b, ki, 0)),  # v
                pl.BlockSpec((1, tq, C), lambda b, qi, ki: (b, qi, 0)),  # x (residual)
                pl.BlockSpec((C, C), lambda b, qi, ki: (0, 0)),          # out proj W^T
                pl.BlockSpec((N, C), lambda b, qi, ki: (0, 0)),          # head one-hot (expand)
            ],
            out_specs=pl.BlockSpec((1, tq, C), lambda b, qi, ki: (b, qi, 0)),
            scratch_shapes=[
                pltpu.VMEM((tq, N), jnp.float32),   # running max, lane-packed per head
                pltpu.VMEM((tq, N), jnp.float32),   # running denom, lane-packed per head
                pltpu.VMEM((tq, C), jnp.float32),   # output accumulator
            ],
        ),
        compiler_params=pltpu.CompilerParams(
            dimension_semantics=("parallel", "parallel", "arbitrary"),
            vmem_limit_bytes=vmem_limit),
    )(q_rot, k_rot, v_all, x_flat, out_w, head_exp)

    return out.reshape(B, H, W, C)


# ---------------- pure-JAX reference (mirrors the PyTorch forward) ----------------
def reference_forward(x, coords, emb, params, *, num_heads,
                      rope_max_harmonics=(1, 1), eps=1e-6):
    B, H, W, C = x.shape
    D = C // num_heads
    S = H * W

    xf = x.astype(jnp.float32)
    xn = xf * jax.lax.rsqrt(jnp.mean(xf * xf, -1, keepdims=True) + eps)
    mod = emb.astype(jnp.float32) @ params["proj_w"]                   # (B, C)
    h = xn * (1.0 + mod[:, None, None, :])

    qkv = h @ params["qkv_w"]                                          # (B,H,W,3C)
    qkv = qkv.reshape(B, H, W, 3, num_heads, D)
    q, k, v = qkv[..., 0, :, :], qkv[..., 1, :, :], qkv[..., 2, :, :]

    scale = jnp.sqrt(jnp.exp(jnp.minimum(params["scale"], math.log(100.0))))  # (N,1)

    def l2n(t):
        return t / jnp.maximum(jnp.linalg.norm(t, axis=-1, keepdims=True), eps)

    q = l2n(q) * scale
    k = l2n(k) * scale

    theta = _rope_theta(coords, num_heads, D, rope_max_harmonics)      # (B,H,W,N,D/2)

    def rotate(t):
        t1, t2 = t[..., :D // 2], t[..., D // 2:]
        return jnp.concatenate([t1 * jnp.cos(theta) - t2 * jnp.sin(theta),
                                t1 * jnp.sin(theta) + t2 * jnp.cos(theta)], -1)

    q, k = rotate(q), rotate(k)

    def bnsd(t):
        return jnp.transpose(t.reshape(B, S, num_heads, D), (0, 2, 1, 3))

    qb, kb, vb = bnsd(q), bnsd(k), bnsd(v)
    logits = jnp.einsum("bnsd,bntd->bnst", qb, kb)
    attn = jax.nn.softmax(logits, axis=-1)
    ob = jnp.einsum("bnst,bntd->bnsd", attn, vb)
    o = jnp.transpose(ob, (0, 2, 1, 3)).reshape(B, H, W, C)
    return x + o @ params["out_w"]


if __name__ == "__main__":
    B, H, W = 2, 8, 8
    dim = 32                 # channels C
    num_heads = 4            # head_dim = 8
    embed_dim = 16
    rope_max_harmonics = (8, 8)

    key = jax.random.PRNGKey(0)
    k1, k2, k3, k4, k5 = jax.random.split(key, 5)

    x = jax.random.normal(k1, (B, H, W, dim), jnp.float32)
    emb = jax.random.normal(k2, (B, embed_dim), jnp.float32)

    ys = jnp.linspace(-1.0, 1.0, H)
    xs = jnp.linspace(-1.0, 1.0, W)
    gh, gw = jnp.meshgrid(ys, xs, indexing="ij")
    coords = jnp.broadcast_to(jnp.stack([gh, gw])[None], (B, 2, H, W)).astype(jnp.float32)

    # Parameters (shapes from the module's __init__). The module zero-inits the
    # AdaRMSNorm.proj and out_proj; deterministic random values are used here so
    # the kernel path is exercised non-trivially.
    params = {
        "proj_w": 0.05 * jax.random.normal(k3, (embed_dim, dim), jnp.float32),        # Linear(E, C).weight^T
        "qkv_w": jax.random.normal(k4, (dim, 3 * dim), jnp.float32) / math.sqrt(dim),  # Linear(C, 3C).weight^T
        "out_w": 0.05 * jax.random.normal(k5, (dim, dim), jnp.float32),                # Linear(C, C).weight^T
        "scale": jnp.full((num_heads, 1), math.log(10.0), jnp.float32),
    }

    out = global_self_attention_block(x, coords, emb, params,
                                      num_heads=num_heads,
                                      rope_max_harmonics=rope_max_harmonics)
    out = jax.block_until_ready(out)

    ref = reference_forward(x, coords, emb, params,
                            num_heads=num_heads,
                            rope_max_harmonics=rope_max_harmonics)

    assert out.shape == (B, H, W, dim)
    # bf16 MXU operands + bf16 RoPE tables (per the perf review) with fp32
    # accumulation => ~1e-2 relative error; 4e-2 is still far below the O(1)
    # scale of any semantic bug.
    assert bool(jnp.allclose(out, ref, rtol=4e-2, atol=4e-2)), "mismatch vs JAX reference"
    print("KERNEL_OK")
</pallas_src>

<mosaic_0001>
module attributes {stable_mosaic.version = 11 : i64} {
  func.func @_qkv_prep_kernel(%arg0: i32, %arg1: i32, %arg2: memref<1x64x32xf32, #tpu.memory_space<vmem>>, %arg3: memref<1x1x32xf32, #tpu.memory_space<vmem>>, %arg4: memref<1x64x32xbf16, #tpu.memory_space<vmem>>, %arg5: memref<1x64x32xbf16, #tpu.memory_space<vmem>>, %arg6: memref<32x160xbf16, #tpu.memory_space<vmem>>, %arg7: memref<32x4xf32, #tpu.memory_space<vmem>>, %arg8: memref<4x32xf32, #tpu.memory_space<vmem>>, %arg9: memref<1x4xf32, #tpu.memory_space<vmem>>, %arg10: memref<1x64x32xbf16, #tpu.memory_space<vmem>>, %arg11: memref<1x64x32xbf16, #tpu.memory_space<vmem>>, %arg12: memref<1x64x32xbf16, #tpu.memory_space<vmem>>) attributes {dimension_semantics = [#tpu.dimension_semantics<parallel>, #tpu.dimension_semantics<parallel>], iteration_bounds = array<i64: 2, 1>, scalar_prefetch = 0 : i64, scratch_operands = 0 : i64, tpu.core_type = #tpu.core_type<tc>, window_params = [{transform_indices = @transform_0, window_bounds = array<i64: 1, 64, 32>}, {transform_indices = @transform_1, window_bounds = array<i64: 1, 1, 32>}, {transform_indices = @transform_2, window_bounds = array<i64: 1, 64, 32>}, {transform_indices = @transform_3, window_bounds = array<i64: 1, 64, 32>}, {pipeline_mode = #tpu.pipeline_mode<synchronous>, transform_indices = @transform_4, window_bounds = array<i64: 32, 160>}, {pipeline_mode = #tpu.pipeline_mode<synchronous>, transform_indices = @transform_5, window_bounds = array<i64: 32, 4>}, {pipeline_mode = #tpu.pipeline_mode<synchronous>, transform_indices = @transform_6, window_bounds = array<i64: 4, 32>}, {pipeline_mode = #tpu.pipeline_mode<synchronous>, transform_indices = @transform_7, window_bounds = array<i64: 1, 4>}, {transform_indices = @transform_8, window_bounds = array<i64: 1, 64, 32>}, {transform_indices = @transform_9, window_bounds = array<i64: 1, 64, 32>}, {transform_indices = @transform_10, window_bounds = array<i64: 1, 64, 32>}]} {
    %c0 = arith.constant 0 : index
    %c0_0 = arith.constant 0 : index
    %c0_1 = arith.constant 0 : index
    %0 = vector.load %arg2[%c0, %c0_0, %c0_1] : memref<1x64x32xf32, #tpu.memory_space<vmem>>, vector<1x64x32xf32>
    %1 = vector.shape_cast %0 : vector<1x64x32xf32> to vector<64x32xf32>
    %2 = arith.mulf %1, %1 : vector<64x32xf32>
    %cst = arith.constant dense<0.000000e+00> : vector<64xf32>
    %3 = vector.multi_reduction <add>, %2, %cst [1] : vector<64x32xf32> to vector<64xf32>
    %4 = vector.shape_cast %3 : vector<64xf32> to vector<64x1xf32>
    %cst_2 = arith.constant 3.200000e+01 : f32
    %5 = vector.broadcast %cst_2 : f32 to vector<64x1xf32>
    %6 = arith.divf %4, %5 : vector<64x1xf32>
    %cst_3 = arith.constant 9.99999997E-7 : f32
    %7 = vector.broadcast %cst_3 : f32 to vector<64x1xf32>
    %8 = arith.addf %6, %7 : vector<64x1xf32>
    %9 = math.rsqrt %8 : vector<64x1xf32>
    %10 = vector.broadcast %9 : vector<64x1xf32> to vector<64x32xf32>
    %11 = arith.mulf %1, %10 : vector<64x32xf32>
    %c0_4 = arith.constant 0 : index
    %c0_5 = arith.constant 0 : index
    %c0_6 = arith.constant 0 : index
    %12 = vector.load %arg3[%c0_4, %c0_5, %c0_6] : memref<1x1x32xf32, #tpu.memory_space<vmem>>, vector<1x1x32xf32>
    %13 = vector.shape_cast %12 : vector<1x1x32xf32> to vector<1x32xf32>
    %cst_7 = arith.constant 1.000000e+00 : f32
    %14 = vector.broadcast %cst_7 : f32 to vector<1x32xf32>
    %15 = arith.addf %14, %13 : vector<1x32xf32>
    %16 = vector.broadcast %15 : vector<1x32xf32> to vector<64x32xf32>
    %17 = arith.mulf %11, %16 : vector<64x32xf32>
    %18 = arith.truncf %17 : vector<64x32xf32> to vector<64x32xbf16>
    %c0_8 = arith.constant 0 : index
    %c0_9 = arith.constant 0 : index
    %19 = vector.load %arg6[%c0_8, %c0_9] : memref<32x160xbf16, #tpu.memory_space<vmem>>, vector<32x160xbf16>
    %cst_10 = arith.constant dense<0.000000e+00> : vector<64x160xf32>
    %20 = tpu.matmul %18, %19, %cst_10 {dimension_numbers = #tpu.dot_dimension_numbers<[1], [0], [0], [1], [0, 0, 1, 1], [], []>} : vector<64x32xbf16>, vector<32x160xbf16>, vector<64x160xf32> -> vector<64x160xf32>
    %21 = vector.extract_strided_slice %20 {offsets = [0, 0], sizes = [64, 32], strides = [1, 1]} : vector<64x160xf32> to vector<64x32xf32>
    %22 = vector.extract_strided_slice %20 {offsets = [0, 32], sizes = [64, 32], strides = [1, 1]} : vector<64x160xf32> to vector<64x32xf32>
    %23 = vector.extract_strided_slice %20 {offsets = [0, 64], sizes = [64, 32], strides = [1, 1]} : vector<64x160xf32> to vector<64x32xf32>
    %24 = vector.extract_strided_slice %20 {offsets = [0, 96], sizes = [64, 32], strides = [1, 1]} : vector<64x160xf32> to vector<64x32xf32>
    %25 = vector.extract_strided_slice %20 {offsets = [0, 128], sizes = [64, 32], strides = [1, 1]} : vector<64x160xf32> to vector<64x32xf32>
    %26 = arith.mulf %21, %21 : vector<64x32xf32>
    %c0_11 = arith.constant 0 : index
    %c0_12 = arith.constant 0 : index
    %27 = vector.load %arg7[%c0_11, %c0_12] : memref<32x4xf32, #tpu.memory_space<vmem>>, vector<32x4xf32>
    %cst_13 = arith.constant dense<0.000000e+00> : vector<64x4xf32>
    %28 = tpu.matmul %26, %27, %cst_13 {dimension_numbers = #tpu.dot_dimension_numbers<[1], [0], [0], [1], [0, 0, 1, 1], [], []>} : vector<64x32xf32>, vector<32x4xf32>, vector<64x4xf32> -> vector<64x4xf32>
    %29 = arith.mulf %23, %23 : vector<64x32xf32>
    %c0_14 = arith.constant 0 : index
    %c0_15 = arith.constant 0 : index
    %30 = vector.load %arg7[%c0_14, %c0_15] : memref<32x4xf32, #tpu.memory_space<vmem>>, vector<32x4xf32>
    %cst_16 = arith.constant dense<0.000000e+00> : vector<64x4xf32>
    %31 = tpu.matmul %29, %30, %cst_16 {dimension_numbers = #tpu.dot_dimension_numbers<[1], [0], [0], [1], [0, 0, 1, 1], [], []>} : vector<64x32xf32>, vector<32x4xf32>, vector<64x4xf32> -> vector<64x4xf32>
    %c0_17 = arith.constant 0 : index
    %c0_18 = arith.constant 0 : index
    %32 = vector.load %arg9[%c0_17, %c0_18] : memref<1x4xf32, #tpu.memory_space<vmem>>, vector<1x4xf32>
    %33 = math.sqrt %28 : vector<64x4xf32>
    %cst_19 = arith.constant 9.99999997E-7 : f32
    %34 = vector.broadcast %cst_19 : f32 to vector<64x4xf32>
    %35 = arith.maximumf %33, %34 : vector<64x4xf32>
    %36 = vector.broadcast %32 : vector<1x4xf32> to vector<64x4xf32>
    %37 = arith.divf %36, %35 : vector<64x4xf32>
    %c0_20 = arith.constant 0 : index
    %c0_21 = arith.constant 0 : index
    %38 = vector.load %arg8[%c0_20, %c0_21] : memref<4x32xf32, #tpu.memory_space<vmem>>, vector<4x32xf32>
    %cst_22 = arith.constant dense<0.000000e+00> : vector<64x32xf32>
    %39 = tpu.matmul %37, %38, %cst_22 {dimension_numbers = #tpu.dot_dimension_numbers<[1], [0], [0], [1], [0, 0, 1, 1], [], []>} : vector<64x4xf32>, vector<4x32xf32>, vector<64x32xf32> -> vector<64x32xf32>
    %40 = math.sqrt %31 : vector<64x4xf32>
    %cst_23 = arith.constant 9.99999997E-7 : f32
    %41 = vector.broadcast %cst_23 : f32 to vector<64x4xf32>
    %42 = arith.maximumf %40, %41 : vector<64x4xf32>
    %43 = vector.broadcast %32 : vector<1x4xf32> to vector<64x4xf32>
    %44 = arith.divf %43, %42 : vector<64x4xf32>
    %c0_24 = arith.constant 0 : index
    %c0_25 = arith.constant 0 : index
    %45 = vector.load %arg8[%c0_24, %c0_25] : memref<4x32xf32, #tpu.memory_space<vmem>>, vector<4x32xf32>
    %cst_26 = arith.constant dense<0.000000e+00> : vector<64x32xf32>
    %46 = tpu.matmul %44, %45, %cst_26 {dimension_numbers = #tpu.dot_dimension_numbers<[1], [0], [0], [1], [0, 0, 1, 1], [], []>} : vector<64x4xf32>, vector<4x32xf32>, vector<64x32xf32> -> vector<64x32xf32>
    %c0_27 = arith.constant 0 : index
    %c0_28 = arith.constant 0 : index
    %c0_29 = arith.constant 0 : index
    %47 = vector.load %arg4[%c0_27, %c0_28, %c0_29] : memref<1x64x32xbf16, #tpu.memory_space<vmem>>, vector<1x64x32xbf16>
    %48 = vector.shape_cast %47 : vector<1x64x32xbf16> to vector<64x32xbf16>
    %49 = arith.extf %48 : vector<64x32xbf16> to vector<64x32xf32>
    %c0_30 = arith.constant 0 : index
    %c0_31 = arith.constant 0 : index
    %c0_32 = arith.constant 0 : index
    %50 = vector.load %arg5[%c0_30, %c0_31, %c0_32] : memref<1x64x32xbf16, #tpu.memory_space<vmem>>, vector<1x64x32xbf16>
    %51 = vector.shape_cast %50 : vector<1x64x32xbf16> to vector<64x32xbf16>
    %52 = arith.extf %51 : vector<64x32xbf16> to vector<64x32xf32>
    %53 = arith.mulf %21, %49 : vector<64x32xf32>
    %54 = arith.mulf %22, %52 : vector<64x32xf32>
    %55 = arith.addf %53, %54 : vector<64x32xf32>
    %56 = arith.mulf %55, %39 : vector<64x32xf32>
    %57 = arith.truncf %56 : vector<64x32xf32> to vector<64x32xbf16>
    %c0_33 = arith.constant 0 : index
    %c0_34 = arith.constant 0 : index
    %c0_35 = arith.constant 0 : index
    %58 = vector.load %arg10[%c0_33, %c0_34, %c0_35] : memref<1x64x32xbf16, #tpu.memory_space<vmem>>, vector<1x64x32xbf16>
    %59 = vector.shape_cast %58 : vector<1x64x32xbf16> to vector<64x32xbf16>
    %60 = vector.shape_cast %57 : vector<64x32xbf16> to vector<1x64x32xbf16>
    tpu.vector_store %arg10[%c0_33, %c0_34, %c0_35], %60 {strides = array<i32>} : memref<1x64x32xbf16, #tpu.memory_space<vmem>>, vector<1x64x32xbf16>,
    %61 = arith.mulf %23, %49 : vector<64x32xf32>
    %62 = arith.mulf %24, %52 : vector<64x32xf32>
    %63 = arith.addf %61, %62 : vector<64x32xf32>
    %64 = arith.mulf %63, %46 : vector<64x32xf32>
    %65 = arith.truncf %64 : vector<64x32xf32> to vector<64x32xbf16>
    %c0_36 = arith.constant 0 : index
    %c0_37 = arith.constant 0 : index
    %c0_38 = arith.constant 0 : index
    %66 = vector.load %arg11[%c0_36, %c0_37, %c0_38] : memref<1x64x32xbf16, #tpu.memory_space<vmem>>, vector<1x64x32xbf16>
    %67 = vector.shape_cast %66 : vector<1x64x32xbf16> to vector<64x32xbf16>
    %68 = vector.shape_cast %65 : vector<64x32xbf16> to vector<1x64x32xbf16>
    tpu.vector_store %arg11[%c0_36, %c0_37, %c0_38], %68 {strides = array<i32>} : memref<1x64x32xbf16, #tpu.memory_space<vmem>>, vector<1x64x32xbf16>,
    %69 = arith.truncf %25 : vector<64x32xf32> to vector<64x32xbf16>
    %c0_39 = arith.constant 0 : index
    %c0_40 = arith.constant 0 : index
    %c0_41 = arith.constant 0 : index
    %70 = vector.load %arg12[%c0_39, %c0_40, %c0_41] : memref<1x64x32xbf16, #tpu.memory_space<vmem>>, vector<1x64x32xbf16>
    %71 = vector.shape_cast %70 : vector<1x64x32xbf16> to vector<64x32xbf16>
    %72 = vector.shape_cast %69 : vector<64x32xbf16> to vector<1x64x32xbf16>
    tpu.vector_store %arg12[%c0_39, %c0_40, %c0_41], %72 {strides = array<i32>} : memref<1x64x32xbf16, #tpu.memory_space<vmem>>, vector<1x64x32xbf16>,
    return
  }
  func.func @transform_0(%arg0: i32, %arg1: i32) -> (i32, i32, i32) {
    %c0_i32 = arith.constant 0 : i32
    %c0_i32_0 = arith.constant 0 : i32
    return %arg0, %arg1, %c0_i32 : i32, i32, i32
  }
  func.func @transform_1(%arg0: i32, %arg1: i32) -> (i32, i32, i32) {
    %c0_i32 = arith.constant 0 : i32
    %c0_i32_0 = arith.constant 0 : i32
    %c0_i32_1 = arith.constant 0 : i32
    return %arg0, %c0_i32, %c0_i32_0 : i32, i32, i32
  }
  func.func @transform_2(%arg0: i32, %arg1: i32) -> (i32, i32, i32) {
    %c0_i32 = arith.constant 0 : i32
    %c0_i32_0 = arith.constant 0 : i32
    return %arg0, %arg1, %c0_i32 : i32, i32, i32
  }
  func.func @transform_3(%arg0: i32, %arg1: i32) -> (i32, i32, i32) {
    %c0_i32 = arith.constant 0 : i32
    %c0_i32_0 = arith.constant 0 : i32
    return %arg0, %arg1, %c0_i32 : i32, i32, i32
  }
  func.func @transform_4(%arg0: i32, %arg1: i32) -> (i32, i32) {
    %c0_i32 = arith.constant 0 : i32
    %c0_i32_0 = arith.constant 0 : i32
    %c0_i32_1 = arith.constant 0 : i32
    return %c0_i32, %c0_i32_0 : i32, i32
  }
  func.func @transform_5(%arg0: i32, %arg1: i32) -> (i32, i32) {
    %c0_i32 = arith.constant 0 : i32
    %c0_i32_0 = arith.constant 0 : i32
    %c0_i32_1 = arith.constant 0 : i32
    return %c0_i32, %c0_i32_0 : i32, i32
  }
  func.func @transform_6(%arg0: i32, %arg1: i32) -> (i32, i32) {
    %c0_i32 = arith.constant 0 : i32
    %c0_i32_0 = arith.constant 0 : i32
    %c0_i32_1 = arith.constant 0 : i32
    return %c0_i32, %c0_i32_0 : i32, i32
  }
  func.func @transform_7(%arg0: i32, %arg1: i32) -> (i32, i32) {
    %c0_i32 = arith.constant 0 : i32
    %c0_i32_0 = arith.constant 0 : i32
    %c0_i32_1 = arith.constant 0 : i32
    return %c0_i32, %c0_i32_0 : i32, i32
  }
  func.func @transform_8(%arg0: i32, %arg1: i32) -> (i32, i32, i32) {
    %c0_i32 = arith.constant 0 : i32
    %c0_i32_0 = arith.constant 0 : i32
    return %arg0, %arg1, %c0_i32 : i32, i32, i32
  }
  func.func @transform_9(%arg0: i32, %arg1: i32) -> (i32, i32, i32) {
    %c0_i32 = arith.constant 0 : i32
    %c0_i32_0 = arith.constant 0 : i32
    return %arg0, %arg1, %c0_i32 : i32, i32, i32
  }
  func.func @transform_10(%arg0: i32, %arg1: i32) -> (i32, i32, i32) {
    %c0_i32 = arith.constant 0 : i32
    %c0_i32_0 = arith.constant 0 : i32
    return %arg0, %arg1, %c0_i32 : i32, i32, i32
  }
}

</mosaic_0001>

<llo_original>
// kernel: tpu_custom_call.1
$region0: #{tpu_custom_call.1}
  #allocation0 [shape = 'u32[]', space=smem, size = 0x4, offset = 0x4, fixed_abs, tag = 'smem constant byte address 0x4 - core index']
  #allocation1 [shape = 'u32[144,128]{1,0:T(1,128)}', space=vmem, size = 0x12000, scoped, tag = 'internal scratch']
  %s0 = inlined_call_operand.vmem [shape: f32[2,64,32], index: 0, kind: input, shape index: {}]
  %s1 = inlined_call_operand.vmem [shape: f32[2,1,32], index: 1, kind: input, shape index: {}]
  %s2 = inlined_call_operand.vmem [shape: bf16[2,64,32], index: 2, kind: input, shape index: {}]
  %s3 = inlined_call_operand.vmem [shape: bf16[2,64,32], index: 3, kind: input, shape index: {}]
  %s4 = inlined_call_operand.vmem [shape: bf16[32,160], index: 4, kind: input, shape index: {}]
  %s5 = inlined_call_operand.vmem [shape: f32[32,4], index: 5, kind: input, shape index: {}]
  %s6 = inlined_call_operand.vmem [shape: f32[4,32], index: 6, kind: input, shape index: {}]
  %s7 = inlined_call_operand.vmem [shape: f32[1,4], index: 7, kind: input, shape index: {}]
  %s8 = inlined_call_operand.vmem [shape: bf16[2,64,32], index: 8, kind: output, shape index: {0}]
  %s9 = inlined_call_operand.vmem [shape: bf16[2,64,32], index: 9, kind: output, shape index: {1}]
  %s10 = inlined_call_operand.vmem [shape: bf16[2,64,32], index: 10, kind: output, shape index: {2}]
  %11 = xla_tuple %s8, %s9, %s10
  %s12 = sld [smem:[#allocation0]]
  $region81: #{tpu_custom_call.1} parent=0
    _
  %s14 = ssub.s32 1, %s12
  %s15 = scalar_select 0, %s14, %s12
  loop: start=0, step=1, limit=4
  $region2: #{tpu_custom_call.1} parent=0 // loop_pre_header
    _
  $region3: #{tpu_custom_call.1} parent=0 // loop_header
    %s17 = sphi 0, %s21
    %p18 = scmp.ge.s32.totalorder %s17, 4
    %s24 = sphi 0, %s36
    %s25 = sphi 0, %s32
    %s26 = sphi 0, %s24
    %s27 = sphi 0, %s25
    %s28 = sphi 0, %s26
    %s29 = sphi 0, %s27
    %s41 = sphi 0, %s43
    %s44 = sphi 0, %s41
    %s45 = sphi 0, %s44
    %s61 = sphi 0, %s45
    %s67 = sphi 0, %s69
    %s70 = sphi 0, %s67
    %s71 = sphi 0, %s70
    %s87 = sphi 0, %s71
    %s95 = sphi 0, %s97
    %s98 = sphi 0, %s95
    %s99 = sphi 0, %s98
    %s115 = sphi 0, %s99
    %s123 = sphi 0, %s125
    %s126 = sphi 0, %s123
    %s127 = sphi 0, %s126
    %s143 = sphi 0, %s127
    %s147 = sphi 0, %s147
    %s149 = sphi 0, %s147
    %s150 = sphi 0, %s149
    %s164 = sphi 0, %s150
    %s168 = sphi 0, %s168
    %s170 = sphi 0, %s168
    %s171 = sphi 0, %s170
    %s185 = sphi 0, %s171
    %s189 = sphi 0, %s189
    %s191 = sphi 0, %s189
    %s192 = sphi 0, %s191
    %s206 = sphi 0, %s192
    %s210 = sphi 0, %s210
    %s212 = sphi 0, %s210
    %s213 = sphi 0, %s212
    %s227 = sphi 0, %s213
    %s235 = sphi 0, %s237
    %s238 = sphi 0, %s235
    %s239 = sphi 0, %s238
    %s255 = sphi 0, %s239
    %s263 = sphi 0, %s265
    %s266 = sphi 0, %s263
    %s267 = sphi 0, %s266
    %s283 = sphi 0, %s267
    %s291 = sphi 0, %s293
    %s294 = sphi 0, %s291
    %s295 = sphi 0, %s294
    %s311 = sphi 0, %s295
  $region4: #{tpu_custom_call.1} parent=0 // loop_header_branch
    %20 = sbr.rel (%p18) target = $region8
  $region5: #{tpu_custom_call.1} parent=0 // loop_body
    %s22 = ssub.s32 %s17, 1
    %s23 = ssub.s32 %s17, 2
    %s30 = sadd.s32 1, %s25
    %p31 = scmp.ge.s32.totalorder %s30, 1
    %s32 = scalar_select %p31, 0, %s30
    %s33 = sadd.s32 1, %s24
    %s34 = scalar_select %p31, %s33, %s24
    %p35 = scmp.ge.s32.totalorder %s34, 2
    %s36 = scalar_select %p35, 0, %s34
    %s37 = ssub.s32 %s24, %s36
    %s38 = ssub.s32 %s25, %s32
    %s39 = sor.u32 %s37, %s38
    %p40 = scmp.eq.s32.totalorder %s39, 0
    %s42 = sadd.s32 %s41, 1
    %s43 = scalar_select %p40, %s41, %s42
    %p46 = pneg %p40
    %p47 = scmp.eq.s32.totalorder %s17, 1
    %p48 = por %p46, %p47
    %p49 = scmp.ne.s32.totalorder %s41, %s44
    %p50 = scmp.eq.s32.totalorder %s17, 0
    %p51 = por %p49, %p50
    %p52 = scmp.ne.s32.totalorder %s41, %s44
    %p53 = scmp.eq.s32.totalorder %s22, 1
    %p54 = por %p52, %p53
    %p55 = scmp.ne.s32.totalorder %s44, %s45
    %p56 = scmp.eq.s32.totalorder %s22, 0
    %p57 = por %p55, %p56
    %p58 = scmp.ne.s32.totalorder %s44, %s45
    %p59 = scmp.eq.s32.totalorder %s23, 1
    %p60 = por %p58, %p59
    %p62 = scmp.ne.s32.totalorder %s45, %s61
    %p63 = scmp.eq.s32.totalorder %s23, 0
    %p64 = por %p62, %p63
    %s65 = ssub.s32 %s24, %s36
    %p66 = scmp.eq.s32.totalorder %s65, 0
    %s68 = sadd.s32 %s67, 1
    %s69 = scalar_select %p66, %s67, %s68
    %p72 = pneg %p66
    %p73 = scmp.eq.s32.totalorder %s17, 1
    %p74 = por %p72, %p73
    %p75 = scmp.ne.s32.totalorder %s67, %s70
    %p76 = scmp.eq.s32.totalorder %s17, 0
    %p77 = por %p75, %p76
    %p78 = scmp.ne.s32.totalorder %s67, %s70
    %p79 = scmp.eq.s32.totalorder %s22, 1
    %p80 = por %p78, %p79
    %p81 = scmp.ne.s32.totalorder %s70, %s71
    %p82 = scmp.eq.s32.totalorder %s22, 0
    %p83 = por %p81, %p82
    %p84 = scmp.ne.s32.totalorder %s70, %s71
    %p85 = scmp.eq.s32.totalorder %s23, 1
    %p86 = por %p84, %p85
    %p88 = scmp.ne.s32.totalorder %s71, %s87
    %p89 = scmp.eq.s32.totalorder %s23, 0
    %p90 = por %p88, %p89
    %s91 = ssub.s32 %s24, %s36
    %s92 = ssub.s32 %s25, %s32
    %s93 = sor.u32 %s91, %s92
    %p94 = scmp.eq.s32.totalorder %s93, 0
    %s96 = sadd.s32 %s95, 1
    %s97 = scalar_select %p94, %s95, %s96
    %p100 = pneg %p94
    %p101 = scmp.eq.s32.totalorder %s17, 1
    %p102 = por %p100, %p101
    %p103 = scmp.ne.s32.totalorder %s95, %s98
    %p104 = scmp.eq.s32.totalorder %s17, 0
    %p105 = por %p103, %p104
    %p106 = scmp.ne.s32.totalorder %s95, %s98
    %p107 = scmp.eq.s32.totalorder %s22, 1
    %p108 = por %p106, %p107
    %p109 = scmp.ne.s32.totalorder %s98, %s99
    %p110 = scmp.eq.s32.totalorder %s22, 0
    %p111 = por %p109, %p110
    %p112 = scmp.ne.s32.totalorder %s98, %s99
    %p113 = scmp.eq.s32.totalorder %s23, 1
    %p114 = por %p112, %p113
    %p116 = scmp.ne.s32.totalorder %s99, %s115
    %p117 = scmp.eq.s32.totalorder %s23, 0
    %p118 = por %p116, %p117
    %s119 = ssub.s32 %s24, %s36
    %s120 = ssub.s32 %s25, %s32
    %s121 = sor.u32 %s119, %s120
    %p122 = scmp.eq.s32.totalorder %s121, 0
    %s124 = sadd.s32 %s123, 1
    %s125 = scalar_select %p122, %s123, %s124
    %p128 = pneg %p122
    %p129 = scmp.eq.s32.totalorder %s17, 1
    %p130 = por %p128, %p129
    %p131 = scmp.ne.s32.totalorder %s123, %s126
    %p132 = scmp.eq.s32.totalorder %s17, 0
    %p133 = por %p131, %p132
    %p134 = scmp.ne.s32.totalorder %s123, %s126
    %p135 = scmp.eq.s32.totalorder %s22, 1
    %p136 = por %p134, %p135
    %p137 = scmp.ne.s32.totalorder %s126, %s127
    %p138 = scmp.eq.s32.totalorder %s22, 0
    %p139 = por %p137, %p138
    %p140 = scmp.ne.s32.totalorder %s126, %s127
    %p141 = scmp.eq.s32.totalorder %s23, 1
    %p142 = por %p140, %p141
    %p144 = scmp.ne.s32.totalorder %s127, %s143
    %p145 = scmp.eq.s32.totalorder %s23, 0
    %p146 = por %p144, %p145
    %s148 = sadd.s32 %s147, 1
    %p151 = scmp.eq.s32.totalorder %s17, 1
    %p152 = scmp.ne.s32.totalorder %s147, %s149
    %p153 = scmp.eq.s32.totalorder %s17, 0
    %p154 = por %p152, %p153
    %p155 = scmp.ne.s32.totalorder %s147, %s149
    %p156 = scmp.eq.s32.totalorder %s22, 1
    %p157 = por %p155, %p156
    %p158 = scmp.ne.s32.totalorder %s149, %s150
    %p159 = scmp.eq.s32.totalorder %s22, 0
    %p160 = por %p158, %p159
    %p161 = scmp.ne.s32.totalorder %s149, %s150
    %p162 = scmp.eq.s32.totalorder %s23, 1
    %p163 = por %p161, %p162
    %p165 = scmp.ne.s32.totalorder %s150, %s164
    %p166 = scmp.eq.s32.totalorder %s23, 0
    %p167 = por %p165, %p166
    %s169 = sadd.s32 %s168, 1
    %p172 = scmp.eq.s32.totalorder %s17, 1
    %p173 = scmp.ne.s32.totalorder %s168, %s170
    %p174 = scmp.eq.s32.totalorder %s17, 0
    %p175 = por %p173, %p174
    %p176 = scmp.ne.s32.totalorder %s168, %s170
    %p177 = scmp.eq.s32.totalorder %s22, 1
    %p178 = por %p176, %p177
    %p179 = scmp.ne.s32.totalorder %s170, %s171
    %p180 = scmp.eq.s32.totalorder %s22, 0
    %p181 = por %p179, %p180
    %p182 = scmp.ne.s32.totalorder %s170, %s171
    %p183 = scmp.eq.s32.totalorder %s23, 1
    %p184 = por %p182, %p183
    %p186 = scmp.ne.s32.totalorder %s171, %s185
    %p187 = scmp.eq.s32.totalorder %s23, 0
    %p188 = por %p186, %p187
    %s190 = sadd.s32 %s189, 1
    %p193 = scmp.eq.s32.totalorder %s17, 1
    %p194 = scmp.ne.s32.totalorder %s189, %s191
    %p195 = scmp.eq.s32.totalorder %s17, 0
    %p196 = por %p194, %p195
    %p197 = scmp.ne.s32.totalorder %s189, %s191
    %p198 = scmp.eq.s32.totalorder %s22, 1
    %p199 = por %p197, %p198
    %p200 = scmp.ne.s32.totalorder %s191, %s192
    %p201 = scmp.eq.s32.totalorder %s22, 0
    %p202 = por %p200, %p201
    %p203 = scmp.ne.s32.totalorder %s191, %s192
    %p204 = scmp.eq.s32.totalorder %s23, 1
    %p205 = por %p203, %p204
    %p207 = scmp.ne.s32.totalorder %s192, %s206
    %p208 = scmp.eq.s32.totalorder %s23, 0
    %p209 = por %p207, %p208
    %s211 = sadd.s32 %s210, 1
    %p214 = scmp.eq.s32.totalorder %s17, 1
    %p215 = scmp.ne.s32.totalorder %s210, %s212
    %p216 = scmp.eq.s32.totalorder %s17, 0
    %p217 = por %p215, %p216
    %p218 = scmp.ne.s32.totalorder %s210, %s212
    %p219 = scmp.eq.s32.totalorder %s22, 1
    %p220 = por %p218, %p219
    %p221 = scmp.ne.s32.totalorder %s212, %s213
    %p222 = scmp.eq.s32.totalorder %s22, 0
    %p223 = por %p221, %p222
    %p224 = scmp.ne.s32.totalorder %s212, %s213
    %p225 = scmp.eq.s32.totalorder %s23, 1
    %p226 = por %p224, %p225
    %p228 = scmp.ne.s32.totalorder %s213, %s227
    %p229 = scmp.eq.s32.totalorder %s23, 0
    %p230 = por %p228, %p229
    %s231 = ssub.s32 %s24, %s36
    %s232 = ssub.s32 %s25, %s32
    %s233 = sor.u32 %s231, %s232
    %p234 = scmp.eq.s32.totalorder %s233, 0
    %s236 = sadd.s32 %s235, 1
    %s237 = scalar_select %p234, %s235, %s236
    %p240 = pneg %p234
    %p241 = scmp.eq.s32.totalorder %s17, 1
    %p242 = por %p240, %p241
    %p243 = scmp.ne.s32.totalorder %s235, %s238
    %p244 = scmp.eq.s32.totalorder %s17, 0
    %p245 = por %p243, %p244
    %p246 = scmp.ne.s32.totalorder %s235, %s238
    %p247 = scmp.eq.s32.totalorder %s22, 1
    %p248 = por %p246, %p247
    %p249 = scmp.ne.s32.totalorder %s238, %s239
    %p250 = scmp.eq.s32.totalorder %s22, 0
    %p251 = por %p249, %p250
    %p252 = scmp.ne.s32.totalorder %s238, %s239
    %p253 = scmp.eq.s32.totalorder %s23, 1
    %p254 = por %p252, %p253
    %p256 = scmp.ne.s32.totalorder %s239, %s255
    %p257 = scmp.eq.s32.totalorder %s23, 0
    %p258 = por %p256, %p257
    %s259 = ssub.s32 %s24, %s36
    %s260 = ssub.s32 %s25, %s32
    %s261 = sor.u32 %s259, %s260
    %p262 = scmp.eq.s32.totalorder %s261, 0
    %s264 = sadd.s32 %s263, 1
    %s265 = scalar_select %p262, %s263, %s264
    %p268 = pneg %p262
    %p269 = scmp.eq.s32.totalorder %s17, 1
    %p270 = por %p268, %p269
    %p271 = scmp.ne.s32.totalorder %s263, %s266
    %p272 = scmp.eq.s32.totalorder %s17, 0
    %p273 = por %p271, %p272
    %p274 = scmp.ne.s32.totalorder %s263, %s266
    %p275 = scmp.eq.s32.totalorder %s22, 1
    %p276 = por %p274, %p275
    %p277 = scmp.ne.s32.totalorder %s266, %s267
    %p278 = scmp.eq.s32.totalorder %s22, 0
    %p279 = por %p277, %p278
    %p280 = scmp.ne.s32.totalorder %s266, %s267
    %p281 = scmp.eq.s32.totalorder %s23, 1
    %p282 = por %p280, %p281
    %p284 = scmp.ne.s32.totalorder %s267, %s283
    %p285 = scmp.eq.s32.totalorder %s23, 0
    %p286 = por %p284, %p285
    %s287 = ssub.s32 %s24, %s36
    %s288 = ssub.s32 %s25, %s32
    %s289 = sor.u32 %s287, %s288
    %p290 = scmp.eq.s32.totalorder %s289, 0
    %s292 = sadd.s32 %s291, 1
    %s293 = scalar_select %p290, %s291, %s292
    %p296 = pneg %p290
    %p297 = scmp.eq.s32.totalorder %s17, 1
    %p298 = por %p296, %p297
    %p299 = scmp.ne.s32.totalorder %s291, %s294
    %p300 = scmp.eq.s32.totalorder %s17, 0
    %p301 = por %p299, %p300
    %p302 = scmp.ne.s32.totalorder %s291, %s294
    %p303 = scmp.eq.s32.totalorder %s22, 1
    %p304 = por %p302, %p303
    %p305 = scmp.ne.s32.totalorder %s294, %s295
    %p306 = scmp.eq.s32.totalorder %s22, 0
    %p307 = por %p305, %p306
    %p308 = scmp.ne.s32.totalorder %s294, %s295
    %p309 = scmp.eq.s32.totalorder %s23, 1
    %p310 = por %p308, %p309
    %p312 = scmp.ne.s32.totalorder %s295, %s311
    %p313 = scmp.eq.s32.totalorder %s23, 0
    %p314 = por %p312, %p313
    %p315 = scmp.le.s32.totalorder 1, %s17
    %p316 = scmp.lt.s32.totalorder %s17, 3
    %p317 = pnand %p315, %p316
    %p318 = pneg %p317
    // Predicated region
    $region9: #{tpu_custom_call.1} parent=5 // pred_check
      _
    $region10: #{tpu_custom_call.1} parent=5 // pred_check_branch
      %320 = sbr.rel (%p317) target = $region12
    $region11: #{tpu_custom_call.1} parent=5 // pred_region
      %s321 = ssub.s32 %s17, 1
      // Predicated region
      $region13: #{tpu_custom_call.1} parent=11 // pred_check
        %p322 = pneg %p160
      $region14: #{tpu_custom_call.1} parent=11 // pred_check_branch
        %324 = sbr.rel (%p322) target = $region16
      $region15: #{tpu_custom_call.1} parent=11 // pred_region
        _
      $region16: #{tpu_custom_call.1} parent=11 // pred_fallthru
        _
      // Predicated region
      $region17: #{tpu_custom_call.1} parent=11 // pred_check
        %p325 = pneg %p181
      $region18: #{tpu_custom_call.1} parent=11 // pred_check_branch
        %327 = sbr.rel (%p325) target = $region20
      $region19: #{tpu_custom_call.1} parent=11 // pred_region
        _
      $region20: #{tpu_custom_call.1} parent=11 // pred_fallthru
        _
      // Predicated region
      $region21: #{tpu_custom_call.1} parent=11 // pred_check
        %p328 = pneg %p202
      $region22: #{tpu_custom_call.1} parent=11 // pred_check_branch
        %330 = sbr.rel (%p328) target = $region24
      $region23: #{tpu_custom_call.1} parent=11 // pred_region
        _
      $region24: #{tpu_custom_call.1} parent=11 // pred_fallthru
        _
      // Predicated region
      $region25: #{tpu_custom_call.1} parent=11 // pred_check
        %p331 = pneg %p223
      $region26: #{tpu_custom_call.1} parent=11 // pred_check_branch
        %333 = sbr.rel (%p331) target = $region28
      $region27: #{tpu_custom_call.1} parent=11 // pred_region
        _
      $region28: #{tpu_custom_call.1} parent=11 // pred_fallthru
        _
    $region12: #{tpu_custom_call.1} parent=5 // pred_fallthru
      _
    %p334 = scmp.lt.s32.totalorder %s17, 2
    // Predicated region
    $region29: #{tpu_custom_call.1} parent=5 // pred_check
      %p335 = pneg %p334
    $region30: #{tpu_custom_call.1} parent=5 // pred_check_branch
      %337 = sbr.rel (%p335) target = $region32
    $region31: #{tpu_custom_call.1} parent=5 // pred_region
      // Predicated region
      $region33: #{tpu_custom_call.1} parent=31 // pred_check
        %p338 = pneg %p51
      $region34: #{tpu_custom_call.1} parent=31 // pred_check_branch
        %340 = sbr.rel (%p338) target = $region36
      $region35: #{tpu_custom_call.1} parent=31 // pred_region
        %s341 = smul.u32 8, %s25
        %p342 = scmp.lt.s32.totalorder %s24, 1
        %s343 = scalar_select %p342, %s24, 1
        %p344 = scmp.lt.s32.totalorder %s341, 7
        %s345 = scalar_select %p344, %s341, 7
        %s346 = smul.addr %s343, 8
        %s347 = sadd.s32 %s345, %s346
        %s348 = smul.addr %s347, 8
        %s349 = scalar_lea.vmem %s0, %s348
        %s350 = smul.u32 8, %s25
      $region36: #{tpu_custom_call.1} parent=31 // pred_fallthru
        _
      // Predicated region
      $region37: #{tpu_custom_call.1} parent=31 // pred_check
        %p351 = pneg %p77
      $region38: #{tpu_custom_call.1} parent=31 // pred_check_branch
        %353 = sbr.rel (%p351) target = $region40
      $region39: #{tpu_custom_call.1} parent=31 // pred_region
        %p354 = scmp.lt.s32.totalorder %s24, 1
        %s355 = scalar_select %p354, %s24, 1
        %s356 = scalar_lea.vmem %s1, %s355
      $region40: #{tpu_custom_call.1} parent=31 // pred_fallthru
        _
      // Predicated region
      $region41: #{tpu_custom_call.1} parent=31 // pred_check
        %p357 = pneg %p105
      $region42: #{tpu_custom_call.1} parent=31 // pred_check_branch
        %359 = sbr.rel (%p357) target = $region44
      $region43: #{tpu_custom_call.1} parent=31 // pred_region
        %s360 = smul.u32 8, %s25
        %p361 = scmp.lt.s32.totalorder %s24, 1
        %s362 = scalar_select %p361, %s24, 1
        %p363 = scmp.lt.s32.totalorder %s360, 7
        %s364 = scalar_select %p363, %s360, 7
        %s365 = smul.addr %s362, 8
        %s366 = sadd.s32 %s364, %s365
        %s367 = smul.addr %s366, 4
        %s368 = scalar_lea.vmem %s2, %s367
        %s369 = smul.u32 8, %s25
      $region44: #{tpu_custom_call.1} parent=31 // pred_fallthru
        _
      // Predicated region
      $region45: #{tpu_custom_call.1} parent=31 // pred_check
        %p370 = pneg %p133
      $region46: #{tpu_custom_call.1} parent=31 // pred_check_branch
        %372 = sbr.rel (%p370) target = $region48
      $region47: #{tpu_custom_call.1} parent=31 // pred_region
        %s373 = smul.u32 8, %s25
        %p374 = scmp.lt.s32.totalorder %s24, 1
        %s375 = scalar_select %p374, %s24, 1
        %p376 = scmp.lt.s32.totalorder %s373, 7
        %s377 = scalar_select %p376, %s373, 7
        %s378 = smul.addr %s375, 8
        %s379 = sadd.s32 %s377, %s378
        %s380 = smul.addr %s379, 4
        %s381 = scalar_lea.vmem %s3, %s380
        %s382 = smul.u32 8, %s25
      $region48: #{tpu_custom_call.1} parent=31 // pred_fallthru
        _
    $region32: #{tpu_custom_call.1} parent=5 // pred_fallthru
      _
    %p383 = scmp.le.s32.totalorder 1, %s17
    %p384 = scmp.lt.s32.totalorder %s17, 3
    %p385 = pnand %p383, %p384
    %p386 = pneg %p385
    // Predicated region
    $region49: #{tpu_custom_call.1} parent=5 // pred_check
      _
    $region50: #{tpu_custom_call.1} parent=5 // pred_check_branch
      %388 = sbr.rel (%p385) target = $region52
    $region51: #{tpu_custom_call.1} parent=5 // pred_region
      %s389 = ssub.s32 %s17, 1
      %s390 = smul.u32 8, %s27
      %p391 = scmp.lt.s32.totalorder %s26, 1
      %s392 = scalar_select %p391, %s26, 1
      %p393 = scmp.lt.s32.totalorder %s390, 7
      %s394 = scalar_select %p393, %s390, 7
      %s395 = smul.addr %s392, 8
      %s396 = sadd.s32 %s394, %s395
      %s397 = smul.addr %s396, 8
      %s398 = scalar_lea.vmem %s0, %s397
      %p399 = pneg %p57
      %p400 = pneg %p54
      %p401 = scmp.lt.s32.totalorder %s26, 1
      %s402 = scalar_select %p401, %s26, 1
      %s403 = scalar_lea.vmem %s1, %s402
      %p404 = pneg %p83
      %p405 = pneg %p80
      %s406 = smul.u32 8, %s27
      %p407 = scmp.lt.s32.totalorder %s26, 1
      %s408 = scalar_select %p407, %s26, 1
      %p409 = scmp.lt.s32.totalorder %s406, 7
      %s410 = scalar_select %p409, %s406, 7
      %s411 = smul.addr %s408, 8
      %s412 = sadd.s32 %s410, %s411
      %s413 = smul.addr %s412, 4
      %s414 = scalar_lea.vmem %s2, %s413
      %p415 = pneg %p111
      %p416 = pneg %p108
      %s417 = smul.u32 8, %s27
      %p418 = scmp.lt.s32.totalorder %s26, 1
      %s419 = scalar_select %p418, %s26, 1
      %p420 = scmp.lt.s32.totalorder %s417, 7
      %s421 = scalar_select %p420, %s417, 7
      %s422 = smul.addr %s419, 8
      %s423 = sadd.s32 %s421, %s422
      %s424 = smul.addr %s423, 4
      %s425 = scalar_lea.vmem %s3, %s424
      %p426 = pneg %p139
      %p427 = pneg %p136
      %p428 = pneg %p160
      %p429 = pneg %p157
      %p430 = pneg %p181
      %p431 = pneg %p178
      %p432 = pneg %p202
      %p433 = pneg %p199
      %p434 = pneg %p223
      %p435 = pneg %p220
      %p436 = pneg %p251
      %p437 = pneg %p248
      %s438 = smul.u32 8, %s27
      %p439 = scmp.lt.s32.totalorder %s26, 1
      %s440 = scalar_select %p439, %s26, 1
      %p441 = scmp.lt.s32.totalorder %s438, 7
      %s442 = scalar_select %p441, %s438, 7
      %s443 = smul.addr %s440, 8
      %s444 = sadd.s32 %s442, %s443
      %s445 = smul.addr %s444, 4
      %s446 = scalar_lea.vmem %s8, %s445
      %p447 = pneg %p279
      %p448 = pneg %p276
      %s449 = smul.u32 8, %s27
      %p450 = scmp.lt.s32.totalorder %s26, 1
      %s451 = scalar_select %p450, %s26, 1
      %p452 = scmp.lt.s32.totalorder %s449, 7
      %s453 = scalar_select %p452, %s449, 7
      %s454 = smul.addr %s451, 8
      %s455 = sadd.s32 %s453, %s454
      %s456 = smul.addr %s455, 4
      %s457 = scalar_lea.vmem %s9, %s456
      %p458 = pneg %p307
      %p459 = pneg %p304
      %s460 = smul.u32 8, %s27
      %p461 = scmp.lt.s32.totalorder %s26, 1
      %s462 = scalar_select %p461, %s26, 1
      %p463 = scmp.lt.s32.totalorder %s460, 7
      %s464 = scalar_select %p463, %s460, 7
      %s465 = smul.addr %s462, 8
      %s466 = sadd.s32 %s464, %s465
      %s467 = smul.addr %s466, 4
      %s468 = scalar_lea.vmem %s10, %s467
      %s469 = smul.u32 8, %s27
      %p470 = scmp.lt.s32.totalorder %s26, 1
      %s471 = scalar_select %p470, %s26, 1
      %p472 = scmp.lt.s32.totalorder %s469, 7
      %s473 = scalar_select %p472, %s469, 7
      %s474 = smul.addr %s471, 8
      %s475 = sadd.s32 %s473, %s474
      %s476 = smul.addr %s475, 8
      %s477 = scalar_lea.vmem %s0, %s476
      %s478 = smul.u32 8, %s27
      %p479 = scmp.lt.s32.totalorder %s26, 1
      %s480 = scalar_select %p479, %s26, 1
      %s481 = scalar_lea.vmem %s1, %s480
      %s482 = smul.u32 8, %s27
      %p483 = scmp.lt.s32.totalorder %s26, 1
      %s484 = scalar_select %p483, %s26, 1
      %p485 = scmp.lt.s32.totalorder %s482, 7
      %s486 = scalar_select %p485, %s482, 7
      %s487 = smul.addr %s484, 8
      %s488 = sadd.s32 %s486, %s487
      %s489 = smul.addr %s488, 4
      %s490 = scalar_lea.vmem %s2, %s489
      %s491 = smul.u32 8, %s27
      %s492 = smul.u32 8, %s27
      %p493 = scmp.lt.s32.totalorder %s26, 1
      %s494 = scalar_select %p493, %s26, 1
      %p495 = scmp.lt.s32.totalorder %s492, 7
      %s496 = scalar_select %p495, %s492, 7
      %s497 = smul.addr %s494, 8
      %s498 = sadd.s32 %s496, %s497
      %s499 = smul.addr %s498, 4
      %s500 = scalar_lea.vmem %s3, %s499
      %s501 = smul.u32 8, %s27
      %s502 = smul.u32 8, %s27
      %p503 = scmp.lt.s32.totalorder %s26, 1
      %s504 = scalar_select %p503, %s26, 1
      %p505 = scmp.lt.s32.totalorder %s502, 7
      %s506 = scalar_select %p505, %s502, 7
      %s507 = smul.addr %s504, 8
      %s508 = sadd.s32 %s506, %s507
      %s509 = smul.addr %s508, 4
      %s510 = scalar_lea.vmem %s8, %s509
      %s511 = smul.u32 8, %s27
      %s512 = smul.u32 8, %s27
      %p513 = scmp.lt.s32.totalorder %s26, 1
      %s514 = scalar_select %p513, %s26, 1
      %p515 = scmp.lt.s32.totalorder %s512, 7
      %s516 = scalar_select %p515, %s512, 7
      %s517 = smul.addr %s514, 8
      %s518 = sadd.s32 %s516, %s517
      %s519 = smul.addr %s518, 4
      %s520 = scalar_lea.vmem %s9, %s519
      %s521 = smul.u32 8, %s27
      %s522 = smul.u32 8, %s27
      %p523 = scmp.lt.s32.totalorder %s26, 1
      %s524 = scalar_select %p523, %s26, 1
      %p525 = scmp.lt.s32.totalorder %s522, 7
      %s526 = scalar_select %p525, %s522, 7
      %s527 = smul.addr %s524, 8
      %s528 = sadd.s32 %s526, %s527
      %s529 = smul.addr %s528, 4
      %s530 = scalar_lea.vmem %s10, %s529
      %s531 = smul.u32 8, %s27
      %v533 = vld [vmem:[%s477] sm:$0xff]
      %v534 = vld [vmem:[%s477 + $0x8] sm:$0xff]
      %v535 = vld [vmem:[%s477 + $0x10] sm:$0xff]
      %v536 = vld [vmem:[%s477 + $0x18] sm:$0xff]
      %v537 = vld [vmem:[%s477 + $0x20] sm:$0xff]
      %v538 = vld [vmem:[%s477 + $0x28] sm:$0xff]
      %v539 = vld [vmem:[%s477 + $0x30] sm:$0xff]
      %v540 = vld [vmem:[%s477 + $0x38] sm:$0xff]
      %v541 = vmul.f32 %v533, %v533
      %v542 = vmul.f32 %v534, %v534
      %v543 = vmul.f32 %v535, %v535
      %v544 = vmul.f32 %v536, %v536
      %v545 = vmul.f32 %v537, %v537
      %v546 = vmul.f32 %v538, %v538
      %v547 = vmul.f32 %v539, %v539
      %v548 = vmul.f32 %v540, %v540
      %vm549 = vcmask 261120
      %v550 = vsel %vm549, %v541, 0.0
      %551 = vadd.xlane.f32.xlu0 %v550
      %v552 = vpop.xlane.xlu0 %551
      %v553 = vsel %vm549, %v542, 0.0
      %554 = vadd.xlane.f32.xlu0 %v553
      %v555 = vpop.xlane.xlu0 %554
      %v556 = vsel %vm549, %v543, 0.0
      %557 = vadd.xlane.f32.xlu0 %v556
      %v558 = vpop.xlane.xlu0 %557
      %v559 = vsel %vm549, %v544, 0.0
      %560 = vadd.xlane.f32.xlu0 %v559
      %v561 = vpop.xlane.xlu0 %560
      %v562 = vsel %vm549, %v545, 0.0
      %563 = vadd.xlane.f32.xlu0 %v562
      %v564 = vpop.xlane.xlu0 %563
      %v565 = vsel %vm549, %v546, 0.0
      %566 = vadd.xlane.f32.xlu0 %v565
      %v567 = vpop.xlane.xlu0 %566
      %v568 = vsel %vm549, %v547, 0.0
      %569 = vadd.xlane.f32.xlu0 %v568
      %v570 = vpop.xlane.xlu0 %569
      %v571 = vsel %vm549, %v548, 0.0
      %572 = vadd.xlane.f32.xlu0 %v571
      %v573 = vpop.xlane.xlu0 %572
      %v574 = vrcp.pop 32.0
      %v575 = vmul.f32 %v552, %v574
      %v576 = vmul.f32 %v555, %v574
      %v577 = vmul.f32 %v558, %v574
      %v578 = vmul.f32 %v561, %v574
      %v579 = vmul.f32 %v564, %v574
      %v580 = vmul.f32 %v567, %v574
      %v581 = vmul.f32 %v570, %v574
      %v582 = vmul.f32 %v573, %v574
      %v583 = vadd.f32 %v575, 1e-06
      %v584 = vadd.f32 %v576, 1e-06
      %v585 = vadd.f32 %v577, 1e-06
      %v586 = vadd.f32 %v578, 1e-06
      %v587 = vadd.f32 %v579, 1e-06
      %v588 = vadd.f32 %v580, 1e-06
      %v589 = vadd.f32 %v581, 1e-06
      %v590 = vadd.f32 %v582, 1e-06
      %v591 = vrsqrt.pop %v583
      %v592 = vrsqrt.pop %v584
      %v593 = vrsqrt.pop %v585
      %v594 = vrsqrt.pop %v586
      %v595 = vrsqrt.pop %v587
      %v596 = vrsqrt.pop %v588
      %v597 = vrsqrt.pop %v589
      %v598 = vrsqrt.pop %v590
      %v599 = vmul.f32 %v533, %v591
      %v600 = vmul.f32 %v534, %v592
      %v601 = vmul.f32 %v535, %v593
      %v602 = vmul.f32 %v536, %v594
      %v603 = vmul.f32 %v537, %v595
      %v604 = vmul.f32 %v538, %v596
      %v605 = vmul.f32 %v539, %v597
      %v606 = vmul.f32 %v540, %v598
      %v607 = vld [vmem:[%s481] sm:$0x1]
      %v608 = vadd.f32 %v607, 1.0
      %v610 = vlaneseq
      %v611 = vshrl.u32 %v610, 7
      %v612 = vsub.s32 0, %v611
      %v613 = vrot.slane %v608, %v612
      %v615 = vmul.f32 %v599, %v613
      %v616 = vmul.f32 %v600, %v613
      %v617 = vmul.f32 %v601, %v613
      %v618 = vmul.f32 %v602, %v613
      %v619 = vmul.f32 %v603, %v613
      %v620 = vmul.f32 %v604, %v613
      %v621 = vmul.f32 %v605, %v613
      %v622 = vmul.f32 %v606, %v613
      %v623 = vpack.c.bf16 %v616, %v615
      %v624 = vpack.c.bf16 %v618, %v617
      %v625 = vpack.c.bf16 %v620, %v619
      %v626 = vpack.c.bf16 %v622, %v621
      %v627 = vld [vmem:[%s4] sm:$0xff]
      %v628 = vld [vmem:[%s4 + $0x8] sm:$0xff]
      %v629 = vld [vmem:[%s4 + $0x10] sm:$0xff]
      %v630 = vld [vmem:[%s4 + $0x18] sm:$0xff]
      %v635 = vunpack.c.l.b16 %v627
      %v636 = vunpack.c.h.b16 %v627
      %v637 = vunpack.c.l.b16 %v628
      %v638 = vunpack.c.h.b16 %v628
      %v639 = vunpack.c.l.b16 %v629
      %v640 = vunpack.c.h.b16 %v629
      %v641 = vunpack.c.l.b16 %v630
      %v642 = vunpack.c.h.b16 %v630
      %v643 = vpack.c.b16 %v637, %v635
      %v644 = vpack.c.b16 %v638, %v636
      %v645 = vpack.c.b16 %v641, %v639
      %v646 = vpack.c.b16 %v642, %v640
      %v652 = vsel %vm549, %v623, 0
      %v655 = vsel %vm549, %v624, 0
      %v658 = vsel %vm549, %v625, 0
      %v661 = vsel %vm549, %v626, 0
      %663 = vmatprep.subr.bf16.mxu0 0
      %664 = vmatpush1.bf16.msra.mxu0 0
      %665 = vmatprep.subr.bf16.mxu0 0
      %666 = vmatpush1.bf16.msra.mxu0 0
      %667 = vmatprep.subr.bf16.mxu0 0
      %668 = vmatpush1.bf16.msra.mxu0 0
      %669 = vmatprep.subr.bf16.mxu0 0
      %670 = vmatpush1.bf16.msra.mxu0 0
      %671 = vmatprep.subr.bf16.mxu0 0
      %672 = vmatpush1.bf16.msra.mxu0 0
      %673 = vmatprep.subr.bf16.mxu0 0
      %674 = vmatpush1.bf16.msra.mxu0 0
      %675 = vmatprep.subr.bf16.mxu0 %v646
      %676 = vmatpush1.bf16.msra.mxu0 %v645
      %677 = vmatprep.subr.bf16.mxu0 %v644
      %678 = vmatpush1.bf16.msra.mxu0 %v643
      %679 = vmatprep.subr.bf16.mxu0 0
      %680 = vmatpush2.bf16.msra.mxu0 0
      %681 = vmatprep.subr.bf16.mxu0 0
      %682 = vmatpush2.bf16.msra.mxu0 0
      %683 = vmatprep.subr.bf16.mxu0 0
      %684 = vmatpush2.bf16.msra.mxu0 0
      %685 = vmatprep.subr.bf16.mxu0 0
      %686 = vmatpush2.bf16.msra.mxu0 0
      %687 = vmatprep.subr.bf16.mxu0 0
      %688 = vmatpush2.bf16.msra.mxu0 0
      %689 = vmatprep.subr.bf16.mxu0 0
      %690 = vmatpush2.bf16.msra.mxu0 0
      %691 = vmatprep.subr.bf16.mxu0 0
      %692 = vmatpush2.bf16.msra.mxu0 0
      %693 = vmatprep.subr.bf16.mxu0 0
      %694 = vmatpush2.bf16.msra.mxu0 0
      %695 = vmatprep.mubr.bf16.mxu0 0
      %696 = vmatmul.mubr.bf16.gmra.mxu0 %v652
      %v697 = vpop.f32.mrf.mxu0
      %v698 = vadd.f32 0.0, %v697
      %v699 = vpop.f32.mrf.mxu0
      %v700 = vadd.f32 0.0, %v699
      %v701 = vpop.f32.mrf.mxu0
      %v702 = vadd.f32 0.0, %v701
      %v703 = vpop.f32.mrf.mxu0
      %v704 = vadd.f32 0.0, %v703
      %705 = vmatprep.mubr.bf16.mxu0 0
      %706 = vmatmul.mubr.bf16.gmra.mxu0 %v655
      %v707 = vpop.f32.mrf.mxu0
      %v708 = vadd.f32 0.0, %v707
      %v709 = vpop.f32.mrf.mxu0
      %v710 = vadd.f32 0.0, %v709
      %v711 = vpop.f32.mrf.mxu0
      %v712 = vadd.f32 0.0, %v711
      %v713 = vpop.f32.mrf.mxu0
      %v714 = vadd.f32 0.0, %v713
      %715 = vmatprep.mubr.bf16.mxu0 0
      %716 = vmatmul.mubr.bf16.gmra.mxu0 %v658
      %v717 = vpop.f32.mrf.mxu0
      %v718 = vadd.f32 0.0, %v717
      %v719 = vpop.f32.mrf.mxu0
      %v720 = vadd.f32 0.0, %v719
      %v721 = vpop.f32.mrf.mxu0
      %v722 = vadd.f32 0.0, %v721
      %v723 = vpop.f32.mrf.mxu0
      %v724 = vadd.f32 0.0, %v723
      %725 = vmatprep.mubr.bf16.mxu0 0
      %726 = vmatmul.mubr.bf16.gmra.mxu0 %v661
      %v727 = vpop.f32.mrf.mxu0
      %v728 = vadd.f32 0.0, %v727
      %v729 = vpop.f32.mrf.mxu0
      %v730 = vadd.f32 0.0, %v729
      %v731 = vpop.f32.mrf.mxu0
      %v732 = vadd.f32 0.0, %v731
      %v733 = vpop.f32.mrf.mxu0
      %v734 = vadd.f32 0.0, %v733
      %735 = vdwg.mxu0
      %v736 = vmul.f32 %v698, %v698
      %v737 = vmul.f32 %v702, %v702
      %v738 = vmul.f32 %v708, %v708
      %v739 = vmul.f32 %v712, %v712
      %v740 = vmul.f32 %v718, %v718
      %v741 = vmul.f32 %v722, %v722
      %v742 = vmul.f32 %v728, %v728
      %v743 = vmul.f32 %v732, %v732
      %v744 = vld [vmem:[%s5] sm:$0xff]
      %v745 = vld [vmem:[%s5 + $0x8] sm:$0xff]
      %v746 = vld [vmem:[%s5 + $0x10] sm:$0xff]
      %v747 = vld [vmem:[%s5 + $0x18] sm:$0xff]
      %v749 = vsel %vm549, %v736, 0
      %v752 = vsel %vm549, %v737, 0
      %v755 = vsel %vm549, %v738, 0
      %v758 = vsel %vm549, %v739, 0
      %v761 = vsel %vm549, %v740, 0
      %v764 = vsel %vm549, %v741, 0
      %v767 = vsel %vm549, %v742, 0
      %v770 = vsel %vm549, %v743, 0
      %772 = vmatprep.subr.mxu0 0.0
      %773 = vmatpush1.msra.mxu0 0.0
      %774 = vmatprep.subr.mxu0 0.0
      %775 = vmatpush1.msra.mxu0 0.0
      %776 = vmatprep.subr.mxu0 0.0
      %777 = vmatpush1.msra.mxu0 0.0
      %778 = vmatprep.subr.mxu0 0.0
      %779 = vmatpush1.msra.mxu0 0.0
      %780 = vmatprep.subr.mxu0 0.0
      %781 = vmatpush1.msra.mxu0 0.0
      %782 = vmatprep.subr.mxu0 0.0
      %783 = vmatpush1.msra.mxu0 0.0
      %784 = vmatprep.subr.mxu0 0.0
      %785 = vmatpush1.msra.mxu0 0.0
      %786 = vmatprep.subr.mxu0 0.0
      %787 = vmatpush1.msra.mxu0 0.0
      %788 = vmatprep.subr.mxu0 0.0
      %789 = vmatpush1.msra.mxu0 0.0
      %790 = vmatprep.subr.mxu0 0.0
      %791 = vmatpush1.msra.mxu0 0.0
      %792 = vmatprep.subr.mxu0 0.0
      %793 = vmatpush1.msra.mxu0 0.0
      %794 = vmatprep.subr.mxu0 0.0
      %795 = vmatpush1.msra.mxu0 0.0
      %796 = vmatprep.subr.mxu0 0.0
      %797 = vmatpush1.msra.mxu0 %v747
      %798 = vmatprep.subr.mxu0 0.0
      %799 = vmatpush1.msra.mxu0 %v746
      %800 = vmatprep.subr.mxu0 0.0
      %801 = vmatpush1.msra.mxu0 %v745
      %802 = vmatprep.subr.mxu0 0.0
      %803 = vmatpush1.msra.mxu0 %v744
      %804 = vmatprep.subr.mxu0 0.0
      %805 = vmatpush2.msra.mxu0 0.0
      %806 = vmatprep.subr.mxu0 0.0
      %807 = vmatpush2.msra.mxu0 0.0
      %808 = vmatprep.subr.mxu0 0.0
      %809 = vmatpush2.msra.mxu0 0.0
      %810 = vmatprep.subr.mxu0 0.0
      %811 = vmatpush2.msra.mxu0 0.0
      %812 = vmatprep.subr.mxu0 0.0
      %813 = vmatpush2.msra.mxu0 0.0
      %814 = vmatprep.subr.mxu0 0.0
      %815 = vmatpush2.msra.mxu0 0.0
      %816 = vmatprep.subr.mxu0 0.0
      %817 = vmatpush2.msra.mxu0 0.0
      %818 = vmatprep.subr.mxu0 0.0
      %819 = vmatpush2.msra.mxu0 0.0
      %820 = vmatprep.subr.mxu0 0.0
      %821 = vmatpush2.msra.mxu0 0.0
      %822 = vmatprep.subr.mxu0 0.0
      %823 = vmatpush2.msra.mxu0 0.0
      %824 = vmatprep.subr.mxu0 0.0
      %825 = vmatpush2.msra.mxu0 0.0
      %826 = vmatprep.subr.mxu0 0.0
      %827 = vmatpush2.msra.mxu0 0.0
      %828 = vmatprep.subr.mxu0 0.0
      %829 = vmatpush2.msra.mxu0 0.0
      %830 = vmatprep.subr.mxu0 0.0
      %831 = vmatpush2.msra.mxu0 0.0
      %832 = vmatprep.subr.mxu0 0.0
      %833 = vmatpush2.msra.mxu0 0.0
      %834 = vmatprep.subr.mxu0 0.0
      %835 = vmatpush2.msra.mxu0 0.0
      %836 = vmatprep.mubr.f32.mxu0 0.0
      %837 = vmatmul.mubr.f32.gmra.mxu0 %v749
      %v838 = vpop.f32.mrf.mxu0
      %v839 = vadd.f32 0.0, %v838
      %v840 = vpop.f32.mrf.mxu0
      %841 = vmatprep.mubr.f32.mxu0 0.0
      %842 = vmatmul.mubr.f32.gmra.mxu0 %v752
      %v843 = vpop.f32.mrf.mxu0
      %v844 = vadd.f32 0.0, %v843
      %v845 = vpop.f32.mrf.mxu0
      %846 = vmatprep.mubr.f32.mxu0 0.0
      %847 = vmatmul.mubr.f32.gmra.mxu0 %v755
      %v848 = vpop.f32.mrf.mxu0
      %v849 = vadd.f32 0.0, %v848
      %v850 = vpop.f32.mrf.mxu0
      %851 = vmatprep.mubr.f32.mxu0 0.0
      %852 = vmatmul.mubr.f32.gmra.mxu0 %v758
      %v853 = vpop.f32.mrf.mxu0
      %v854 = vadd.f32 0.0, %v853
      %v855 = vpop.f32.mrf.mxu0
      %856 = vmatprep.mubr.f32.mxu0 0.0
      %857 = vmatmul.mubr.f32.gmra.mxu0 %v761
      %v858 = vpop.f32.mrf.mxu0
      %v859 = vadd.f32 0.0, %v858
      %v860 = vpop.f32.mrf.mxu0
      %861 = vmatprep.mubr.f32.mxu0 0.0
      %862 = vmatmul.mubr.f32.gmra.mxu0 %v764
      %v863 = vpop.f32.mrf.mxu0
      %v864 = vadd.f32 0.0, %v863
      %v865 = vpop.f32.mrf.mxu0
      %866 = vmatprep.mubr.f32.mxu0 0.0
      %867 = vmatmul.mubr.f32.gmra.mxu0 %v767
      %v868 = vpop.f32.mrf.mxu0
      %v869 = vadd.f32 0.0, %v868
      %v870 = vpop.f32.mrf.mxu0
      %871 = vmatprep.mubr.f32.mxu0 0.0
      %872 = vmatmul.mubr.f32.gmra.mxu0 %v770
      %v873 = vpop.f32.mrf.mxu0
      %v874 = vadd.f32 0.0, %v873
      %v875 = vpop.f32.mrf.mxu0
      %876 = vdwg.mxu0
      %877 = vrot.lane.b32.xlu0 %v736, 64
      %v878 = vpop.permute.xlu0 %877
      %879 = vrot.lane.b32.xlu0 %v737, 64
      %v880 = vpop.permute.xlu0 %879
      %881 = vrot.lane.b32.xlu0 %v738, 64
      %v882 = vpop.permute.xlu0 %881
      %883 = vrot.lane.b32.xlu0 %v739, 64
      %v884 = vpop.permute.xlu0 %883
      %885 = vrot.lane.b32.xlu0 %v740, 64
      %v886 = vpop.permute.xlu0 %885
      %887 = vrot.lane.b32.xlu0 %v741, 64
      %v888 = vpop.permute.xlu0 %887
      %889 = vrot.lane.b32.xlu0 %v742, 64
      %v890 = vpop.permute.xlu0 %889
      %891 = vrot.lane.b32.xlu0 %v743, 64
      %v892 = vpop.permute.xlu0 %891
      %v893 = vsel %vm549, %v878, 0
      %v895 = vsel %vm549, %v880, 0
      %v897 = vsel %vm549, %v882, 0
      %v899 = vsel %vm549, %v884, 0
      %v901 = vsel %vm549, %v886, 0
      %v903 = vsel %vm549, %v888, 0
      %v905 = vsel %vm549, %v890, 0
      %v907 = vsel %vm549, %v892, 0
      %909 = vmatprep.subr.mxu0 0.0
      %910 = vmatpush1.msra.mxu0 0.0
      %911 = vmatprep.subr.mxu0 0.0
      %912 = vmatpush1.msra.mxu0 0.0
      %913 = vmatprep.subr.mxu0 0.0
      %914 = vmatpush1.msra.mxu0 0.0
      %915 = vmatprep.subr.mxu0 0.0
      %916 = vmatpush1.msra.mxu0 0.0
      %917 = vmatprep.subr.mxu0 0.0
      %918 = vmatpush1.msra.mxu0 0.0
      %919 = vmatprep.subr.mxu0 0.0
      %920 = vmatpush1.msra.mxu0 0.0
      %921 = vmatprep.subr.mxu0 0.0
      %922 = vmatpush1.msra.mxu0 0.0
      %923 = vmatprep.subr.mxu0 0.0
      %924 = vmatpush1.msra.mxu0 0.0
      %925 = vmatprep.subr.mxu0 0.0
      %926 = vmatpush1.msra.mxu0 0.0
      %927 = vmatprep.subr.mxu0 0.0
      %928 = vmatpush1.msra.mxu0 0.0
      %929 = vmatprep.subr.mxu0 0.0
      %930 = vmatpush1.msra.mxu0 0.0
      %931 = vmatprep.subr.mxu0 0.0
      %932 = vmatpush1.msra.mxu0 0.0
      %933 = vmatprep.subr.mxu0 0.0
      %934 = vmatpush1.msra.mxu0 %v747
      %935 = vmatprep.subr.mxu0 0.0
      %936 = vmatpush1.msra.mxu0 %v746
      %937 = vmatprep.subr.mxu0 0.0
      %938 = vmatpush1.msra.mxu0 %v745
      %939 = vmatprep.subr.mxu0 0.0
      %940 = vmatpush1.msra.mxu0 %v744
      %941 = vmatprep.subr.mxu0 0.0
      %942 = vmatpush2.msra.mxu0 0.0
      %943 = vmatprep.subr.mxu0 0.0
      %944 = vmatpush2.msra.mxu0 0.0
      %945 = vmatprep.subr.mxu0 0.0
      %946 = vmatpush2.msra.mxu0 0.0
      %947 = vmatprep.subr.mxu0 0.0
      %948 = vmatpush2.msra.mxu0 0.0
      %949 = vmatprep.subr.mxu0 0.0
      %950 = vmatpush2.msra.mxu0 0.0
      %951 = vmatprep.subr.mxu0 0.0
      %952 = vmatpush2.msra.mxu0 0.0
      %953 = vmatprep.subr.mxu0 0.0
      %954 = vmatpush2.msra.mxu0 0.0
      %955 = vmatprep.subr.mxu0 0.0
      %956 = vmatpush2.msra.mxu0 0.0
      %957 = vmatprep.subr.mxu0 0.0
      %958 = vmatpush2.msra.mxu0 0.0
      %959 = vmatprep.subr.mxu0 0.0
      %960 = vmatpush2.msra.mxu0 0.0
      %961 = vmatprep.subr.mxu0 0.0
      %962 = vmatpush2.msra.mxu0 0.0
      %963 = vmatprep.subr.mxu0 0.0
      %964 = vmatpush2.msra.mxu0 0.0
      %965 = vmatprep.subr.mxu0 0.0
      %966 = vmatpush2.msra.mxu0 0.0
      %967 = vmatprep.subr.mxu0 0.0
      %968 = vmatpush2.msra.mxu0 0.0
      %969 = vmatprep.subr.mxu0 0.0
      %970 = vmatpush2.msra.mxu0 0.0
      %971 = vmatprep.subr.mxu0 0.0
      %972 = vmatpush2.msra.mxu0 0.0
      %973 = vmatprep.mubr.f32.mxu0 0.0
      %974 = vmatmul.mubr.f32.gmra.mxu0 %v893
      %v975 = vpop.f32.mrf.mxu0
      %v976 = vadd.f32 0.0, %v975
      %v977 = vpop.f32.mrf.mxu0
      %978 = vmatprep.mubr.f32.mxu0 0.0
      %979 = vmatmul.mubr.f32.gmra.mxu0 %v895
      %v980 = vpop.f32.mrf.mxu0
      %v981 = vadd.f32 0.0, %v980
      %v982 = vpop.f32.mrf.mxu0
      %983 = vmatprep.mubr.f32.mxu0 0.0
      %984 = vmatmul.mubr.f32.gmra.mxu0 %v897
      %v985 = vpop.f32.mrf.mxu0
      %v986 = vadd.f32 0.0, %v985
      %v987 = vpop.f32.mrf.mxu0
      %988 = vmatprep.mubr.f32.mxu0 0.0
      %989 = vmatmul.mubr.f32.gmra.mxu0 %v899
      %v990 = vpop.f32.mrf.mxu0
      %v991 = vadd.f32 0.0, %v990
      %v992 = vpop.f32.mrf.mxu0
      %993 = vmatprep.mubr.f32.mxu0 0.0
      %994 = vmatmul.mubr.f32.gmra.mxu0 %v901
      %v995 = vpop.f32.mrf.mxu0
      %v996 = vadd.f32 0.0, %v995
      %v997 = vpop.f32.mrf.mxu0
      %998 = vmatprep.mubr.f32.mxu0 0.0
      %999 = vmatmul.mubr.f32.gmra.mxu0 %v903
      %v1000 = vpop.f32.mrf.mxu0
      %v1001 = vadd.f32 0.0, %v1000
      %v1002 = vpop.f32.mrf.mxu0
      %1003 = vmatprep.mubr.f32.mxu0 0.0
      %1004 = vmatmul.mubr.f32.gmra.mxu0 %v905
      %v1005 = vpop.f32.mrf.mxu0
      %v1006 = vadd.f32 0.0, %v1005
      %v1007 = vpop.f32.mrf.mxu0
      %1008 = vmatprep.mubr.f32.mxu0 0.0
      %1009 = vmatmul.mubr.f32.gmra.mxu0 %v907
      %v1010 = vpop.f32.mrf.mxu0
      %v1011 = vadd.f32 0.0, %v1010
      %v1012 = vpop.f32.mrf.mxu0
      %1013 = vdwg.mxu0
      %v1014 = vld [vmem:[%s7] sm:$0x1]
      %v1015 = vrsqrt.pop %v839
      %v1016 = vmul.f32 %v839, %v1015
      %vm1017 = vcmp.eq.f32.partialorder %v839, inf
      %v1018 = vsel %vm1017, %v839, %v1016
      %vm1019 = vcmp.eq.f32.partialorder %v839, 0.0
      %v1020 = vand.u32 %v839, 2147483648
      %v1021 = vsel %vm1019, %v1020, %v1018
      %v1022 = vrsqrt.pop %v844
      %v1023 = vmul.f32 %v844, %v1022
      %vm1024 = vcmp.eq.f32.partialorder %v844, inf
      %v1025 = vsel %vm1024, %v844, %v1023
      %vm1026 = vcmp.eq.f32.partialorder %v844, 0.0
      %v1027 = vand.u32 %v844, 2147483648
      %v1028 = vsel %vm1026, %v1027, %v1025
      %v1029 = vrsqrt.pop %v849
      %v1030 = vmul.f32 %v849, %v1029
      %vm1031 = vcmp.eq.f32.partialorder %v849, inf
      %v1032 = vsel %vm1031, %v849, %v1030
      %vm1033 = vcmp.eq.f32.partialorder %v849, 0.0
      %v1034 = vand.u32 %v849, 2147483648
      %v1035 = vsel %vm1033, %v1034, %v1032
      %v1036 = vrsqrt.pop %v854
      %v1037 = vmul.f32 %v854, %v1036
      %vm1038 = vcmp.eq.f32.partialorder %v854, inf
      %v1039 = vsel %vm1038, %v854, %v1037
      %vm1040 = vcmp.eq.f32.partialorder %v854, 0.0
      %v1041 = vand.u32 %v854, 2147483648
      %v1042 = vsel %vm1040, %v1041, %v1039
      %v1043 = vrsqrt.pop %v859
      %v1044 = vmul.f32 %v859, %v1043
      %vm1045 = vcmp.eq.f32.partialorder %v859, inf
      %v1046 = vsel %vm1045, %v859, %v1044
      %vm1047 = vcmp.eq.f32.partialorder %v859, 0.0
      %v1048 = vand.u32 %v859, 2147483648
      %v1049 = vsel %vm1047, %v1048, %v1046
      %v1050 = vrsqrt.pop %v864
      %v1051 = vmul.f32 %v864, %v1050
      %vm1052 = vcmp.eq.f32.partialorder %v864, inf
      %v1053 = vsel %vm1052, %v864, %v1051
      %vm1054 = vcmp.eq.f32.partialorder %v864, 0.0
      %v1055 = vand.u32 %v864, 2147483648
      %v1056 = vsel %vm1054, %v1055, %v1053
      %v1057 = vrsqrt.pop %v869
      %v1058 = vmul.f32 %v869, %v1057
      %vm1059 = vcmp.eq.f32.partialorder %v869, inf
      %v1060 = vsel %vm1059, %v869, %v1058
      %vm1061 = vcmp.eq.f32.partialorder %v869, 0.0
      %v1062 = vand.u32 %v869, 2147483648
      %v1063 = vsel %vm1061, %v1062, %v1060
      %v1064 = vrsqrt.pop %v874
      %v1065 = vmul.f32 %v874, %v1064
      %vm1066 = vcmp.eq.f32.partialorder %v874, inf
      %v1067 = vsel %vm1066, %v874, %v1065
      %vm1068 = vcmp.eq.f32.partialorder %v874, 0.0
      %v1069 = vand.u32 %v874, 2147483648
      %v1070 = vsel %vm1068, %v1069, %v1067
      %v1071 = vmax.f32 %v1021, 1e-06
      %v1072 = vmax.f32 %v1028, 1e-06
      %v1073 = vmax.f32 %v1035, 1e-06
      %v1074 = vmax.f32 %v1042, 1e-06
      %v1075 = vmax.f32 %v1049, 1e-06
      %v1076 = vmax.f32 %v1056, 1e-06
      %v1077 = vmax.f32 %v1063, 1e-06
      %v1078 = vmax.f32 %v1070, 1e-06
      %v1080 = vlaneseq
      %v1081 = vshrl.u32 %v1080, 7
      %v1082 = vsub.s32 0, %v1081
      %v1083 = vrot.slane %v1014, %v1082
      %v1085 = vrcp.pop %v1071
      %v1086 = vmul.f32 %v1083, %v1085
      %v1087 = vrcp.pop %v1072
      %v1088 = vmul.f32 %v1083, %v1087
      %v1089 = vrcp.pop %v1073
      %v1090 = vmul.f32 %v1083, %v1089
      %v1091 = vrcp.pop %v1074
      %v1092 = vmul.f32 %v1083, %v1091
      %v1093 = vrcp.pop %v1075
      %v1094 = vmul.f32 %v1083, %v1093
      %v1095 = vrcp.pop %v1076
      %v1096 = vmul.f32 %v1083, %v1095
      %v1097 = vrcp.pop %v1077
      %v1098 = vmul.f32 %v1083, %v1097
      %v1099 = vrcp.pop %v1078
      %v1100 = vmul.f32 %v1083, %v1099
      %v1101 = vld [vmem:[%s6] sm:$0xf]
      %vm1102 = vcmask 31744
      %v1104 = vsel %vm1102, %v1086, 0
      %v1107 = vsel %vm1102, %v1088, 0
      %v1110 = vsel %vm1102, %v1090, 0
      %v1113 = vsel %vm1102, %v1092, 0
      %v1116 = vsel %vm1102, %v1094, 0
      %v1119 = vsel %vm1102, %v1096, 0
      %v1122 = vsel %vm1102, %v1098, 0
      %v1125 = vsel %vm1102, %v1100, 0
      %vm1127 = vcmask 1043456
      %v1129 = vsel %vm1127, %v1101, 0
      %1131 = vmatprep.subr.mxu0 0.0
      %1132 = vmatpush1.msra.mxu0 0.0
      %1133 = vmatprep.subr.mxu0 0.0
      %1134 = vmatpush1.msra.mxu0 0.0
      %1135 = vmatprep.subr.mxu0 0.0
      %1136 = vmatpush1.msra.mxu0 0.0
      %1137 = vmatprep.subr.mxu0 0.0
      %1138 = vmatpush1.msra.mxu0 0.0
      %1139 = vmatprep.subr.mxu0 0.0
      %1140 = vmatpush1.msra.mxu0 0.0
      %1141 = vmatprep.subr.mxu0 0.0
      %1142 = vmatpush1.msra.mxu0 0.0
      %1143 = vmatprep.subr.mxu0 0.0
      %1144 = vmatpush1.msra.mxu0 0.0
      %1145 = vmatprep.subr.mxu0 0.0
      %1146 = vmatpush1.msra.mxu0 0.0
      %1147 = vmatprep.subr.mxu0 0.0
      %1148 = vmatpush1.msra.mxu0 0.0
      %1149 = vmatprep.subr.mxu0 0.0
      %1150 = vmatpush1.msra.mxu0 0.0
      %1151 = vmatprep.subr.mxu0 0.0
      %1152 = vmatpush1.msra.mxu0 0.0
      %1153 = vmatprep.subr.mxu0 0.0
      %1154 = vmatpush1.msra.mxu0 0.0
      %1155 = vmatprep.subr.mxu0 0.0
      %1156 = vmatpush1.msra.mxu0 0.0
      %1157 = vmatprep.subr.mxu0 0.0
      %1158 = vmatpush1.msra.mxu0 0.0
      %1159 = vmatprep.subr.mxu0 0.0
      %1160 = vmatpush1.msra.mxu0 0.0
      %1161 = vmatprep.subr.mxu0 0.0
      %1162 = vmatpush1.msra.mxu0 %v1129
      %1163 = vmatprep.subr.mxu0 0.0
      %1164 = vmatpush2.msra.mxu0 0.0
      %1165 = vmatprep.subr.mxu0 0.0
      %1166 = vmatpush2.msra.mxu0 0.0
      %1167 = vmatprep.subr.mxu0 0.0
      %1168 = vmatpush2.msra.mxu0 0.0
      %1169 = vmatprep.subr.mxu0 0.0
      %1170 = vmatpush2.msra.mxu0 0.0
      %1171 = vmatprep.subr.mxu0 0.0
      %1172 = vmatpush2.msra.mxu0 0.0
      %1173 = vmatprep.subr.mxu0 0.0
      %1174 = vmatpush2.msra.mxu0 0.0
      %1175 = vmatprep.subr.mxu0 0.0
      %1176 = vmatpush2.msra.mxu0 0.0
      %1177 = vmatprep.subr.mxu0 0.0
      %1178 = vmatpush2.msra.mxu0 0.0
      %1179 = vmatprep.subr.mxu0 0.0
      %1180 = vmatpush2.msra.mxu0 0.0
      %1181 = vmatprep.subr.mxu0 0.0
      %1182 = vmatpush2.msra.mxu0 0.0
      %1183 = vmatprep.subr.mxu0 0.0
      %1184 = vmatpush2.msra.mxu0 0.0
      %1185 = vmatprep.subr.mxu0 0.0
      %1186 = vmatpush2.msra.mxu0 0.0
      %1187 = vmatprep.subr.mxu0 0.0
      %1188 = vmatpush2.msra.mxu0 0.0
      %1189 = vmatprep.subr.mxu0 0.0
      %1190 = vmatpush2.msra.mxu0 0.0
      %1191 = vmatprep.subr.mxu0 0.0
      %1192 = vmatpush2.msra.mxu0 0.0
      %1193 = vmatprep.subr.mxu0 0.0
      %1194 = vmatpush2.msra.mxu0 0.0
      %1195 = vmatprep.mubr.f32.mxu0 0.0
      %1196 = vmatmul.mubr.f32.gmra.mxu0 %v1104
      %v1197 = vpop.f32.mrf.mxu0
      %v1198 = vadd.f32 0.0, %v1197
      %v1199 = vpop.f32.mrf.mxu0
      %1200 = vmatprep.mubr.f32.mxu0 0.0
      %1201 = vmatmul.mubr.f32.gmra.mxu0 %v1107
      %v1202 = vpop.f32.mrf.mxu0
      %v1203 = vadd.f32 0.0, %v1202
      %v1204 = vpop.f32.mrf.mxu0
      %1205 = vmatprep.mubr.f32.mxu0 0.0
      %1206 = vmatmul.mubr.f32.gmra.mxu0 %v1110
      %v1207 = vpop.f32.mrf.mxu0
      %v1208 = vadd.f32 0.0, %v1207
      %v1209 = vpop.f32.mrf.mxu0
      %1210 = vmatprep.mubr.f32.mxu0 0.0
      %1211 = vmatmul.mubr.f32.gmra.mxu0 %v1113
      %v1212 = vpop.f32.mrf.mxu0
      %v1213 = vadd.f32 0.0, %v1212
      %v1214 = vpop.f32.mrf.mxu0
      %1215 = vmatprep.mubr.f32.mxu0 0.0
      %1216 = vmatmul.mubr.f32.gmra.mxu0 %v1116
      %v1217 = vpop.f32.mrf.mxu0
      %v1218 = vadd.f32 0.0, %v1217
      %v1219 = vpop.f32.mrf.mxu0
      %1220 = vmatprep.mubr.f32.mxu0 0.0
      %1221 = vmatmul.mubr.f32.gmra.mxu0 %v1119
      %v1222 = vpop.f32.mrf.mxu0
      %v1223 = vadd.f32 0.0, %v1222
      %v1224 = vpop.f32.mrf.mxu0
      %1225 = vmatprep.mubr.f32.mxu0 0.0
      %1226 = vmatmul.mubr.f32.gmra.mxu0 %v1122
      %v1227 = vpop.f32.mrf.mxu0
      %v1228 = vadd.f32 0.0, %v1227
      %v1229 = vpop.f32.mrf.mxu0
      %1230 = vmatprep.mubr.f32.mxu0 0.0
      %1231 = vmatmul.mubr.f32.gmra.mxu0 %v1125
      %v1232 = vpop.f32.mrf.mxu0
      %v1233 = vadd.f32 0.0, %v1232
      %v1234 = vpop.f32.mrf.mxu0
      %1235 = vdwg.mxu0
      %v1236 = vrsqrt.pop %v976
      %v1237 = vmul.f32 %v976, %v1236
      %vm1238 = vcmp.eq.f32.partialorder %v976, inf
      %v1239 = vsel %vm1238, %v976, %v1237
      %vm1240 = vcmp.eq.f32.partialorder %v976, 0.0
      %v1241 = vand.u32 %v976, 2147483648
      %v1242 = vsel %vm1240, %v1241, %v1239
      %v1243 = vrsqrt.pop %v981
      %v1244 = vmul.f32 %v981, %v1243
      %vm1245 = vcmp.eq.f32.partialorder %v981, inf
      %v1246 = vsel %vm1245, %v981, %v1244
      %vm1247 = vcmp.eq.f32.partialorder %v981, 0.0
      %v1248 = vand.u32 %v981, 2147483648
      %v1249 = vsel %vm1247, %v1248, %v1246
      %v1250 = vrsqrt.pop %v986
      %v1251 = vmul.f32 %v986, %v1250
      %vm1252 = vcmp.eq.f32.partialorder %v986, inf
      %v1253 = vsel %vm1252, %v986, %v1251
      %vm1254 = vcmp.eq.f32.partialorder %v986, 0.0
      %v1255 = vand.u32 %v986, 2147483648
      %v1256 = vsel %vm1254, %v1255, %v1253
      %v1257 = vrsqrt.pop %v991
      %v1258 = vmul.f32 %v991, %v1257
      %vm1259 = vcmp.eq.f32.partialorder %v991, inf
      %v1260 = vsel %vm1259, %v991, %v1258
      %vm1261 = vcmp.eq.f32.partialorder %v991, 0.0
      %v1262 = vand.u32 %v991, 2147483648
      %v1263 = vsel %vm1261, %v1262, %v1260
      %v1264 = vrsqrt.pop %v996
      %v1265 = vmul.f32 %v996, %v1264
      %vm1266 = vcmp.eq.f32.partialorder %v996, inf
      %v1267 = vsel %vm1266, %v996, %v1265
      %vm1268 = vcmp.eq.f32.partialorder %v996, 0.0
      %v1269 = vand.u32 %v996, 2147483648
      %v1270 = vsel %vm1268, %v1269, %v1267
      %v1271 = vrsqrt.pop %v1001
      %v1272 = vmul.f32 %v1001, %v1271
      %vm1273 = vcmp.eq.f32.partialorder %v1001, inf
      %v1274 = vsel %vm1273, %v1001, %v1272
      %vm1275 = vcmp.eq.f32.partialorder %v1001, 0.0
      %v1276 = vand.u32 %v1001, 2147483648
      %v1277 = vsel %vm1275, %v1276, %v1274
      %v1278 = vrsqrt.pop %v1006
      %v1279 = vmul.f32 %v1006, %v1278
      %vm1280 = vcmp.eq.f32.partialorder %v1006, inf
      %v1281 = vsel %vm1280, %v1006, %v1279
      %vm1282 = vcmp.eq.f32.partialorder %v1006, 0.0
      %v1283 = vand.u32 %v1006, 2147483648
      %v1284 = vsel %vm1282, %v1283, %v1281
      %v1285 = vrsqrt.pop %v1011
      %v1286 = vmul.f32 %v1011, %v1285
      %vm1287 = vcmp.eq.f32.partialorder %v1011, inf
      %v1288 = vsel %vm1287, %v1011, %v1286
      %vm1289 = vcmp.eq.f32.partialorder %v1011, 0.0
      %v1290 = vand.u32 %v1011, 2147483648
      %v1291 = vsel %vm1289, %v1290, %v1288
      %v1292 = vmax.f32 %v1242, 1e-06
      %v1293 = vmax.f32 %v1249, 1e-06
      %v1294 = vmax.f32 %v1256, 1e-06
      %v1295 = vmax.f32 %v1263, 1e-06
      %v1296 = vmax.f32 %v1270, 1e-06
      %v1297 = vmax.f32 %v1277, 1e-06
      %v1298 = vmax.f32 %v1284, 1e-06
      %v1299 = vmax.f32 %v1291, 1e-06
      %v1300 = vrcp.pop %v1292
      %v1301 = vmul.f32 %v1083, %v1300
      %v1302 = vrcp.pop %v1293
      %v1303 = vmul.f32 %v1083, %v1302
      %v1304 = vrcp.pop %v1294
      %v1305 = vmul.f32 %v1083, %v1304
      %v1306 = vrcp.pop %v1295
      %v1307 = vmul.f32 %v1083, %v1306
      %v1308 = vrcp.pop %v1296
      %v1309 = vmul.f32 %v1083, %v1308
      %v1310 = vrcp.pop %v1297
      %v1311 = vmul.f32 %v1083, %v1310
      %v1312 = vrcp.pop %v1298
      %v1313 = vmul.f32 %v1083, %v1312
      %v1314 = vrcp.pop %v1299
      %v1315 = vmul.f32 %v1083, %v1314
      %v1317 = vsel %vm1102, %v1301, 0
      %v1320 = vsel %vm1102, %v1303, 0
      %v1323 = vsel %vm1102, %v1305, 0
      %v1326 = vsel %vm1102, %v1307, 0
      %v1329 = vsel %vm1102, %v1309, 0
      %v1332 = vsel %vm1102, %v1311, 0
      %v1335 = vsel %vm1102, %v1313, 0
      %v1338 = vsel %vm1102, %v1315, 0
      %1340 = vmatprep.subr.mxu0 0.0
      %1341 = vmatpush1.msra.mxu0 0.0
      %1342 = vmatprep.subr.mxu0 0.0
      %1343 = vmatpush1.msra.mxu0 0.0
      %1344 = vmatprep.subr.mxu0 0.0
      %1345 = vmatpush1.msra.mxu0 0.0
      %1346 = vmatprep.subr.mxu0 0.0
      %1347 = vmatpush1.msra.mxu0 0.0
      %1348 = vmatprep.subr.mxu0 0.0
      %1349 = vmatpush1.msra.mxu0 0.0
      %1350 = vmatprep.subr.mxu0 0.0
      %1351 = vmatpush1.msra.mxu0 0.0
      %1352 = vmatprep.subr.mxu0 0.0
      %1353 = vmatpush1.msra.mxu0 0.0
      %1354 = vmatprep.subr.mxu0 0.0
      %1355 = vmatpush1.msra.mxu0 0.0
      %1356 = vmatprep.subr.mxu0 0.0
      %1357 = vmatpush1.msra.mxu0 0.0
      %1358 = vmatprep.subr.mxu0 0.0
      %1359 = vmatpush1.msra.mxu0 0.0
      %1360 = vmatprep.subr.mxu0 0.0
      %1361 = vmatpush1.msra.mxu0 0.0
      %1362 = vmatprep.subr.mxu0 0.0
      %1363 = vmatpush1.msra.mxu0 0.0
      %1364 = vmatprep.subr.mxu0 0.0
      %1365 = vmatpush1.msra.mxu0 0.0
      %1366 = vmatprep.subr.mxu0 0.0
      %1367 = vmatpush1.msra.mxu0 0.0
      %1368 = vmatprep.subr.mxu0 0.0
      %1369 = vmatpush1.msra.mxu0 0.0
      %1370 = vmatprep.subr.mxu0 0.0
      %1371 = vmatpush1.msra.mxu0 %v1129
      %1372 = vmatprep.subr.mxu0 0.0
      %1373 = vmatpush2.msra.mxu0 0.0
      %1374 = vmatprep.subr.mxu0 0.0
      %1375 = vmatpush2.msra.mxu0 0.0
      %1376 = vmatprep.subr.mxu0 0.0
      %1377 = vmatpush2.msra.mxu0 0.0
      %1378 = vmatprep.subr.mxu0 0.0
      %1379 = vmatpush2.msra.mxu0 0.0
      %1380 = vmatprep.subr.mxu0 0.0
      %1381 = vmatpush2.msra.mxu0 0.0
      %1382 = vmatprep.subr.mxu0 0.0
      %1383 = vmatpush2.msra.mxu0 0.0
      %1384 = vmatprep.subr.mxu0 0.0
      %1385 = vmatpush2.msra.mxu0 0.0
      %1386 = vmatprep.subr.mxu0 0.0
      %1387 = vmatpush2.msra.mxu0 0.0
      %1388 = vmatprep.subr.mxu0 0.0
      %1389 = vmatpush2.msra.mxu0 0.0
      %1390 = vmatprep.subr.mxu0 0.0
      %1391 = vmatpush2.msra.mxu0 0.0
      %1392 = vmatprep.subr.mxu0 0.0
      %1393 = vmatpush2.msra.mxu0 0.0
      %1394 = vmatprep.subr.mxu0 0.0
      %1395 = vmatpush2.msra.mxu0 0.0
      %1396 = vmatprep.subr.mxu0 0.0
      %1397 = vmatpush2.msra.mxu0 0.0
      %1398 = vmatprep.subr.mxu0 0.0
      %1399 = vmatpush2.msra.mxu0 0.0
      %1400 = vmatprep.subr.mxu0 0.0
      %1401 = vmatpush2.msra.mxu0 0.0
      %1402 = vmatprep.subr.mxu0 0.0
      %1403 = vmatpush2.msra.mxu0 0.0
      %1404 = vmatprep.mubr.f32.mxu0 0.0
      %1405 = vmatmul.mubr.f32.gmra.mxu0 %v1317
      %v1406 = vpop.f32.mrf.mxu0
      %v1407 = vadd.f32 0.0, %v1406
      %v1408 = vpop.f32.mrf.mxu0
      %1409 = vmatprep.mubr.f32.mxu0 0.0
      %1410 = vmatmul.mubr.f32.gmra.mxu0 %v1320
      %v1411 = vpop.f32.mrf.mxu0
      %v1412 = vadd.f32 0.0, %v1411
      %v1413 = vpop.f32.mrf.mxu0
      %1414 = vmatprep.mubr.f32.mxu0 0.0
      %1415 = vmatmul.mubr.f32.gmra.mxu0 %v1323
      %v1416 = vpop.f32.mrf.mxu0
      %v1417 = vadd.f32 0.0, %v1416
      %v1418 = vpop.f32.mrf.mxu0
      %1419 = vmatprep.mubr.f32.mxu0 0.0
      %1420 = vmatmul.mubr.f32.gmra.mxu0 %v1326
      %v1421 = vpop.f32.mrf.mxu0
      %v1422 = vadd.f32 0.0, %v1421
      %v1423 = vpop.f32.mrf.mxu0
      %1424 = vmatprep.mubr.f32.mxu0 0.0
      %1425 = vmatmul.mubr.f32.gmra.mxu0 %v1329
      %v1426 = vpop.f32.mrf.mxu0
      %v1427 = vadd.f32 0.0, %v1426
      %v1428 = vpop.f32.mrf.mxu0
      %1429 = vmatprep.mubr.f32.mxu0 0.0
      %1430 = vmatmul.mubr.f32.gmra.mxu0 %v1332
      %v1431 = vpop.f32.mrf.mxu0
      %v1432 = vadd.f32 0.0, %v1431
      %v1433 = vpop.f32.mrf.mxu0
      %1434 = vmatprep.mubr.f32.mxu0 0.0
      %1435 = vmatmul.mubr.f32.gmra.mxu0 %v1335
      %v1436 = vpop.f32.mrf.mxu0
      %v1437 = vadd.f32 0.0, %v1436
      %v1438 = vpop.f32.mrf.mxu0
      %1439 = vmatprep.mubr.f32.mxu0 0.0
      %1440 = vmatmul.mubr.f32.gmra.mxu0 %v1338
      %v1441 = vpop.f32.mrf.mxu0
      %v1442 = vadd.f32 0.0, %v1441
      %v1443 = vpop.f32.mrf.mxu0
      %1444 = vdwg.mxu0
      %v1445 = vld [vmem:[%s490] sm:$0xf]
      %v1446 = vld [vmem:[%s490 + $0x4] sm:$0xf]
      %v1447 = vld [vmem:[%s490 + $0x8] sm:$0xf]
      %v1448 = vld [vmem:[%s490 + $0xc] sm:$0xf]
      %v1449 = vld [vmem:[%s490 + $0x10] sm:$0xf]
      %v1450 = vld [vmem:[%s490 + $0x14] sm:$0xf]
      %v1451 = vld [vmem:[%s490 + $0x18] sm:$0xf]
      %v1452 = vld [vmem:[%s490 + $0x1c] sm:$0xf]
      %v1453 = vunpack.c.l.bf16 %v1445
      %v1454 = vunpack.c.l.bf16 %v1446
      %v1455 = vunpack.c.l.bf16 %v1447
      %v1456 = vunpack.c.l.bf16 %v1448
      %v1457 = vunpack.c.l.bf16 %v1449
      %v1458 = vunpack.c.l.bf16 %v1450
      %v1459 = vunpack.c.l.bf16 %v1451
      %v1460 = vunpack.c.l.bf16 %v1452
      %v1461 = vld [vmem:[%s500] sm:$0xf]
      %v1462 = vld [vmem:[%s500 + $0x4] sm:$0xf]
      %v1463 = vld [vmem:[%s500 + $0x8] sm:$0xf]
      %v1464 = vld [vmem:[%s500 + $0xc] sm:$0xf]
      %v1465 = vld [vmem:[%s500 + $0x10] sm:$0xf]
      %v1466 = vld [vmem:[%s500 + $0x14] sm:$0xf]
      %v1467 = vld [vmem:[%s500 + $0x18] sm:$0xf]
      %v1468 = vld [vmem:[%s500 + $0x1c] sm:$0xf]
      %v1469 = vunpack.c.l.bf16 %v1461
      %v1470 = vunpack.c.l.bf16 %v1462
      %v1471 = vunpack.c.l.bf16 %v1463
      %v1472 = vunpack.c.l.bf16 %v1464
      %v1473 = vunpack.c.l.bf16 %v1465
      %v1474 = vunpack.c.l.bf16 %v1466
      %v1475 = vunpack.c.l.bf16 %v1467
      %v1476 = vunpack.c.l.bf16 %v1468
      %v1477 = vmul.f32 %v698, %v1453
      %v1478 = vmul.f32 %v702, %v1454
      %v1479 = vmul.f32 %v708, %v1455
      %v1480 = vmul.f32 %v712, %v1456
      %v1481 = vmul.f32 %v718, %v1457
      %v1482 = vmul.f32 %v722, %v1458
      %v1483 = vmul.f32 %v728, %v1459
      %v1484 = vmul.f32 %v732, %v1460
      %1493 = vrot.lane.b32.xlu0 %v1469, 32
      %v1494 = vpop.permute.xlu0 %1493
      %1495 = vrot.lane.b32.xlu0 %v1470, 32
      %v1496 = vpop.permute.xlu0 %1495
      %1497 = vrot.lane.b32.xlu0 %v1471, 32
      %v1498 = vpop.permute.xlu0 %1497
      %1499 = vrot.lane.b32.xlu0 %v1472, 32
      %v1500 = vpop.permute.xlu0 %1499
      %1501 = vrot.lane.b32.xlu0 %v1473, 32
      %v1502 = vpop.permute.xlu0 %1501
      %1503 = vrot.lane.b32.xlu0 %v1474, 32
      %v1504 = vpop.permute.xlu0 %1503
      %1505 = vrot.lane.b32.xlu0 %v1475, 32
      %v1506 = vpop.permute.xlu0 %1505
      %1507 = vrot.lane.b32.xlu0 %v1476, 32
      %v1508 = vpop.permute.xlu0 %1507
      %v1517 = vmul.f32 %v698, %v1494
      %v1518 = vmul.f32 %v702, %v1496
      %v1519 = vmul.f32 %v708, %v1498
      %v1520 = vmul.f32 %v712, %v1500
      %v1521 = vmul.f32 %v718, %v1502
      %v1522 = vmul.f32 %v722, %v1504
      %v1523 = vmul.f32 %v728, %v1506
      %v1524 = vmul.f32 %v732, %v1508
      %1533 = vrot.lane.b32.xlu0 %v1517, 96
      %v1534 = vpop.permute.xlu0 %1533
      %1535 = vrot.lane.b32.xlu0 %v1518, 96
      %v1536 = vpop.permute.xlu0 %1535
      %1537 = vrot.lane.b32.xlu0 %v1519, 96
      %v1538 = vpop.permute.xlu0 %1537
      %1539 = vrot.lane.b32.xlu0 %v1520, 96
      %v1540 = vpop.permute.xlu0 %1539
      %1541 = vrot.lane.b32.xlu0 %v1521, 96
      %v1542 = vpop.permute.xlu0 %1541
      %1543 = vrot.lane.b32.xlu0 %v1522, 96
      %v1544 = vpop.permute.xlu0 %1543
      %1545 = vrot.lane.b32.xlu0 %v1523, 96
      %v1546 = vpop.permute.xlu0 %1545
      %1547 = vrot.lane.b32.xlu0 %v1524, 96
      %v1548 = vpop.permute.xlu0 %1547
      %v1557 = vadd.f32 %v1477, %v1534
      %v1558 = vadd.f32 %v1478, %v1536
      %v1559 = vadd.f32 %v1479, %v1538
      %v1560 = vadd.f32 %v1480, %v1540
      %v1561 = vadd.f32 %v1481, %v1542
      %v1562 = vadd.f32 %v1482, %v1544
      %v1563 = vadd.f32 %v1483, %v1546
      %v1564 = vadd.f32 %v1484, %v1548
      %v1565 = vmul.f32 %v1557, %v1198
      %v1566 = vmul.f32 %v1558, %v1203
      %v1567 = vmul.f32 %v1559, %v1208
      %v1568 = vmul.f32 %v1560, %v1213
      %v1569 = vmul.f32 %v1561, %v1218
      %v1570 = vmul.f32 %v1562, %v1223
      %v1571 = vmul.f32 %v1563, %v1228
      %v1572 = vmul.f32 %v1564, %v1233
      %v1573 = vpack.c.bf16 %v1566, %v1565
      %v1574 = vpack.c.bf16 %v1568, %v1567
      %v1575 = vpack.c.bf16 %v1570, %v1569
      %v1576 = vpack.c.bf16 %v1572, %v1571
      %v1581 = vunpack.c.l.b16 %v1573
      %v1582 = vunpack.c.h.b16 %v1573
      %v1583 = vunpack.c.l.b16 %v1574
      %v1584 = vunpack.c.h.b16 %v1574
      %v1585 = vunpack.c.l.b16 %v1575
      %v1586 = vunpack.c.h.b16 %v1575
      %v1587 = vunpack.c.l.b16 %v1576
      %v1588 = vunpack.c.h.b16 %v1576
      %v1589 = vpack.c.b16 %v1581, %v1581
      %v1590 = vpack.c.b16 %v1582, %v1582
      %v1591 = vpack.c.b16 %v1583, %v1583
      %v1592 = vpack.c.b16 %v1584, %v1584
      %v1593 = vpack.c.b16 %v1585, %v1585
      %v1594 = vpack.c.b16 %v1586, %v1586
      %v1595 = vpack.c.b16 %v1587, %v1587
      %v1596 = vpack.c.b16 %v1588, %v1588
      %vm1605 = vcmask 257024
      %1606 = vst.msk [vmem:[%s510] sm:$0xf] %vm1605, %v1589
      %1607 = vst.msk [vmem:[%s510 + $0x4] sm:$0xf] %vm1605, %v1590
      %1608 = vst.msk [vmem:[%s510 + $0x8] sm:$0xf] %vm1605, %v1591
      %1609 = vst.msk [vmem:[%s510 + $0xc] sm:$0xf] %vm1605, %v1592
      %1610 = vst.msk [vmem:[%s510 + $0x10] sm:$0xf] %vm1605, %v1593
      %1611 = vst.msk [vmem:[%s510 + $0x14] sm:$0xf] %vm1605, %v1594
      %1612 = vst.msk [vmem:[%s510 + $0x18] sm:$0xf] %vm1605, %v1595
      %1613 = vst.msk [vmem:[%s510 + $0x1c] sm:$0xf] %vm1605, %v1596
      %1622 = vrot.lane.b32.xlu0 %v1453, 64
      %v1623 = vpop.permute.xlu0 %1622
      %1624 = vrot.lane.b32.xlu0 %v1454, 64
      %v1625 = vpop.permute.xlu0 %1624
      %1626 = vrot.lane.b32.xlu0 %v1455, 64
      %v1627 = vpop.permute.xlu0 %1626
      %1628 = vrot.lane.b32.xlu0 %v1456, 64
      %v1629 = vpop.permute.xlu0 %1628
      %1630 = vrot.lane.b32.xlu0 %v1457, 64
      %v1631 = vpop.permute.xlu0 %1630
      %1632 = vrot.lane.b32.xlu0 %v1458, 64
      %v1633 = vpop.permute.xlu0 %1632
      %1634 = vrot.lane.b32.xlu0 %v1459, 64
      %v1635 = vpop.permute.xlu0 %1634
      %1636 = vrot.lane.b32.xlu0 %v1460, 64
      %v1637 = vpop.permute.xlu0 %1636
      %v1646 = vmul.f32 %v698, %v1623
      %v1647 = vmul.f32 %v702, %v1625
      %v1648 = vmul.f32 %v708, %v1627
      %v1649 = vmul.f32 %v712, %v1629
      %v1650 = vmul.f32 %v718, %v1631
      %v1651 = vmul.f32 %v722, %v1633
      %v1652 = vmul.f32 %v728, %v1635
      %v1653 = vmul.f32 %v732, %v1637
      %1654 = vrot.lane.b32.xlu0 %v1469, 96
      %v1655 = vpop.permute.xlu0 %1654
      %1656 = vrot.lane.b32.xlu0 %v1470, 96
      %v1657 = vpop.permute.xlu0 %1656
      %1658 = vrot.lane.b32.xlu0 %v1471, 96
      %v1659 = vpop.permute.xlu0 %1658
      %1660 = vrot.lane.b32.xlu0 %v1472, 96
      %v1661 = vpop.permute.xlu0 %1660
      %1662 = vrot.lane.b32.xlu0 %v1473, 96
      %v1663 = vpop.permute.xlu0 %1662
      %1664 = vrot.lane.b32.xlu0 %v1474, 96
      %v1665 = vpop.permute.xlu0 %1664
      %1666 = vrot.lane.b32.xlu0 %v1475, 96
      %v1667 = vpop.permute.xlu0 %1666
      %1668 = vrot.lane.b32.xlu0 %v1476, 96
      %v1669 = vpop.permute.xlu0 %1668
      %v1678 = vmul.f32 %v698, %v1655
      %v1679 = vmul.f32 %v702, %v1657
      %v1680 = vmul.f32 %v708, %v1659
      %v1681 = vmul.f32 %v712, %v1661
      %v1682 = vmul.f32 %v718, %v1663
      %v1683 = vmul.f32 %v722, %v1665
      %v1684 = vmul.f32 %v728, %v1667
      %v1685 = vmul.f32 %v732, %v1669
      %1694 = vrot.lane.b32.xlu0 %v1678, 96
      %v1695 = vpop.permute.xlu0 %1694
      %1696 = vrot.lane.b32.xlu0 %v1679, 96
      %v1697 = vpop.permute.xlu0 %1696
      %1698 = vrot.lane.b32.xlu0 %v1680, 96
      %v1699 = vpop.permute.xlu0 %1698
      %1700 = vrot.lane.b32.xlu0 %v1681, 96
      %v1701 = vpop.permute.xlu0 %1700
      %1702 = vrot.lane.b32.xlu0 %v1682, 96
      %v1703 = vpop.permute.xlu0 %1702
      %1704 = vrot.lane.b32.xlu0 %v1683, 96
      %v1705 = vpop.permute.xlu0 %1704
      %1706 = vrot.lane.b32.xlu0 %v1684, 96
      %v1707 = vpop.permute.xlu0 %1706
      %1708 = vrot.lane.b32.xlu0 %v1685, 96
      %v1709 = vpop.permute.xlu0 %1708
      %v1718 = vadd.f32 %v1646, %v1695
      %v1719 = vadd.f32 %v1647, %v1697
      %v1720 = vadd.f32 %v1648, %v1699
      %v1721 = vadd.f32 %v1649, %v1701
      %v1722 = vadd.f32 %v1650, %v1703
      %v1723 = vadd.f32 %v1651, %v1705
      %v1724 = vadd.f32 %v1652, %v1707
      %v1725 = vadd.f32 %v1653, %v1709
      %1734 = vrot.lane.b32.xlu0 %v1407, 64
      %v1735 = vpop.permute.xlu0 %1734
      %1736 = vrot.lane.b32.xlu0 %v1412, 64
      %v1737 = vpop.permute.xlu0 %1736
      %1738 = vrot.lane.b32.xlu0 %v1417, 64
      %v1739 = vpop.permute.xlu0 %1738
      %1740 = vrot.lane.b32.xlu0 %v1422, 64
      %v1741 = vpop.permute.xlu0 %1740
      %1742 = vrot.lane.b32.xlu0 %v1427, 64
      %v1743 = vpop.permute.xlu0 %1742
      %1744 = vrot.lane.b32.xlu0 %v1432, 64
      %v1745 = vpop.permute.xlu0 %1744
      %1746 = vrot.lane.b32.xlu0 %v1437, 64
      %v1747 = vpop.permute.xlu0 %1746
      %1748 = vrot.lane.b32.xlu0 %v1442, 64
      %v1749 = vpop.permute.xlu0 %1748
      %v1758 = vmul.f32 %v1718, %v1735
      %v1759 = vmul.f32 %v1719, %v1737
      %v1760 = vmul.f32 %v1720, %v1739
      %v1761 = vmul.f32 %v1721, %v1741
      %v1762 = vmul.f32 %v1722, %v1743
      %v1763 = vmul.f32 %v1723, %v1745
      %v1764 = vmul.f32 %v1724, %v1747
      %v1765 = vmul.f32 %v1725, %v1749
      %v1766 = vpack.c.bf16 %v1759, %v1758
      %v1767 = vpack.c.bf16 %v1761, %v1760
      %v1768 = vpack.c.bf16 %v1763, %v1762
      %v1769 = vpack.c.bf16 %v1765, %v1764
      %v1774 = vunpack.c.l.b16 %v1766
      %v1775 = vunpack.c.h.b16 %v1766
      %v1776 = vunpack.c.l.b16 %v1767
      %v1777 = vunpack.c.h.b16 %v1767
      %v1778 = vunpack.c.l.b16 %v1768
      %v1779 = vunpack.c.h.b16 %v1768
      %v1780 = vunpack.c.l.b16 %v1769
      %v1781 = vunpack.c.h.b16 %v1769
      %v1782 = vpack.c.b16 %v1774, %v1774
      %v1783 = vpack.c.b16 %v1775, %v1775
      %v1784 = vpack.c.b16 %v1776, %v1776
      %v1785 = vpack.c.b16 %v1777, %v1777
      %v1786 = vpack.c.b16 %v1778, %v1778
      %v1787 = vpack.c.b16 %v1779, %v1779
      %v1788 = vpack.c.b16 %v1780, %v1780
      %v1789 = vpack.c.b16 %v1781, %v1781
      %1790 = vrot.lane.b32.xlu0 %v1782, 64
      %v1791 = vpop.permute.xlu0 %1790
      %1792 = vrot.lane.b32.xlu0 %v1783, 64
      %v1793 = vpop.permute.xlu0 %1792
      %1794 = vrot.lane.b32.xlu0 %v1784, 64
      %v1795 = vpop.permute.xlu0 %1794
      %1796 = vrot.lane.b32.xlu0 %v1785, 64
      %v1797 = vpop.permute.xlu0 %1796
      %1798 = vrot.lane.b32.xlu0 %v1786, 64
      %v1799 = vpop.permute.xlu0 %1798
      %1800 = vrot.lane.b32.xlu0 %v1787, 64
      %v1801 = vpop.permute.xlu0 %1800
      %1802 = vrot.lane.b32.xlu0 %v1788, 64
      %v1803 = vpop.permute.xlu0 %1802
      %1804 = vrot.lane.b32.xlu0 %v1789, 64
      %v1805 = vpop.permute.xlu0 %1804
      %1814 = vst.msk [vmem:[%s520] sm:$0xf] %vm1605, %v1791
      %1815 = vst.msk [vmem:[%s520 + $0x4] sm:$0xf] %vm1605, %v1793
      %1816 = vst.msk [vmem:[%s520 + $0x8] sm:$0xf] %vm1605, %v1795
      %1817 = vst.msk [vmem:[%s520 + $0xc] sm:$0xf] %vm1605, %v1797
      %1818 = vst.msk [vmem:[%s520 + $0x10] sm:$0xf] %vm1605, %v1799
      %1819 = vst.msk [vmem:[%s520 + $0x14] sm:$0xf] %vm1605, %v1801
      %1820 = vst.msk [vmem:[%s520 + $0x18] sm:$0xf] %vm1605, %v1803
      %1821 = vst.msk [vmem:[%s520 + $0x1c] sm:$0xf] %vm1605, %v1805
      %v1822 = vpack.c.bf16 %v704, %v700
      %v1823 = vpack.c.bf16 %v714, %v710
      %v1824 = vpack.c.bf16 %v724, %v720
      %v1825 = vpack.c.bf16 %v734, %v730
      %v1830 = vunpack.c.l.b16 %v1822
      %v1831 = vunpack.c.h.b16 %v1822
      %v1832 = vunpack.c.l.b16 %v1823
      %v1833 = vunpack.c.h.b16 %v1823
      %v1834 = vunpack.c.l.b16 %v1824
      %v1835 = vunpack.c.h.b16 %v1824
      %v1836 = vunpack.c.l.b16 %v1825
      %v1837 = vunpack.c.h.b16 %v1825
      %v1838 = vpack.c.b16 %v1830, %v1830
      %v1839 = vpack.c.b16 %v1831, %v1831
      %v1840 = vpack.c.b16 %v1832, %v1832
      %v1841 = vpack.c.b16 %v1833, %v1833
      %v1842 = vpack.c.b16 %v1834, %v1834
      %v1843 = vpack.c.b16 %v1835, %v1835
      %v1844 = vpack.c.b16 %v1836, %v1836
      %v1845 = vpack.c.b16 %v1837, %v1837
      %1854 = vst.msk [vmem:[%s530] sm:$0xf] %vm1605, %v1838
      %1855 = vst.msk [vmem:[%s530 + $0x4] sm:$0xf] %vm1605, %v1839
      %1856 = vst.msk [vmem:[%s530 + $0x8] sm:$0xf] %vm1605, %v1840
      %1857 = vst.msk [vmem:[%s530 + $0xc] sm:$0xf] %vm1605, %v1841
      %1858 = vst.msk [vmem:[%s530 + $0x10] sm:$0xf] %vm1605, %v1842
      %1859 = vst.msk [vmem:[%s530 + $0x14] sm:$0xf] %vm1605, %v1843
      %1860 = vst.msk [vmem:[%s530 + $0x18] sm:$0xf] %vm1605, %v1844
      %1861 = vst.msk [vmem:[%s530 + $0x1c] sm:$0xf] %vm1605, %v1845
      %s1862 = smul.u32 8, %s27
      %p1863 = scmp.lt.s32.totalorder %s26, 1
      %s1864 = scalar_select %p1863, %s26, 1
      %p1865 = scmp.lt.s32.totalorder %s1862, 7
      %s1866 = scalar_select %p1865, %s1862, 7
      %s1867 = smul.addr %s1864, 8
      %s1868 = sadd.s32 %s1866, %s1867
      %s1869 = smul.addr %s1868, 4
      %s1870 = scalar_lea.vmem %s8, %s1869
      %s1871 = smul.u32 8, %s27
      %p1872 = scmp.lt.s32.totalorder %s26, 1
      %s1873 = scalar_select %p1872, %s26, 1
      %p1874 = scmp.lt.s32.totalorder %s1871, 7
      %s1875 = scalar_select %p1874, %s1871, 7
      %s1876 = smul.addr %s1873, 8
      %s1877 = sadd.s32 %s1875, %s1876
      %s1878 = smul.addr %s1877, 4
      %s1879 = scalar_lea.vmem %s9, %s1878
      %s1880 = smul.u32 8, %s27
      %p1881 = scmp.lt.s32.totalorder %s26, 1
      %s1882 = scalar_select %p1881, %s26, 1
      %p1883 = scmp.lt.s32.totalorder %s1880, 7
      %s1884 = scalar_select %p1883, %s1880, 7
      %s1885 = smul.addr %s1882, 8
      %s1886 = sadd.s32 %s1884, %s1885
      %s1887 = smul.addr %s1886, 4
      %s1888 = scalar_lea.vmem %s10, %s1887
      // Predicated region
      $region53: #{tpu_custom_call.1} parent=51 // pred_check
        %p1889 = pneg %p248
      $region54: #{tpu_custom_call.1} parent=51 // pred_check_branch
        %1891 = sbr.rel (%p1889) target = $region56
      $region55: #{tpu_custom_call.1} parent=51 // pred_region
        %s1892 = smul.u32 8, %s27
      $region56: #{tpu_custom_call.1} parent=51 // pred_fallthru
        _
      // Predicated region
      $region57: #{tpu_custom_call.1} parent=51 // pred_check
        %p1893 = pneg %p276
      $region58: #{tpu_custom_call.1} parent=51 // pred_check_branch
        %1895 = sbr.rel (%p1893) target = $region60
      $region59: #{tpu_custom_call.1} parent=51 // pred_region
        %s1896 = smul.u32 8, %s27
      $region60: #{tpu_custom_call.1} parent=51 // pred_fallthru
        _
      // Predicated region
      $region61: #{tpu_custom_call.1} parent=51 // pred_check
        %p1897 = pneg %p304
      $region62: #{tpu_custom_call.1} parent=51 // pred_check_branch
        %1899 = sbr.rel (%p1897) target = $region64
      $region63: #{tpu_custom_call.1} parent=51 // pred_region
        %s1900 = smul.u32 8, %s27
      $region64: #{tpu_custom_call.1} parent=51 // pred_fallthru
        _
    $region52: #{tpu_custom_call.1} parent=5 // pred_fallthru
      _
    %p1901 = scmp.le.s32.totalorder 2, %s17
    // Predicated region
    $region65: #{tpu_custom_call.1} parent=5 // pred_check
      %p1902 = pneg %p1901
    $region66: #{tpu_custom_call.1} parent=5 // pred_check_branch
      %1904 = sbr.rel (%p1902) target = $region68
    $region67: #{tpu_custom_call.1} parent=5 // pred_region
      %s1905 = ssub.s32 %s17, 2
      // Predicated region
      $region69: #{tpu_custom_call.1} parent=67 // pred_check
        %p1906 = pneg %p254
      $region70: #{tpu_custom_call.1} parent=67 // pred_check_branch
        %1908 = sbr.rel (%p1906) target = $region72
      $region71: #{tpu_custom_call.1} parent=67 // pred_region
        %s1909 = smul.u32 8, %s29
        %p1910 = scmp.lt.s32.totalorder %s28, 1
        %s1911 = scalar_select %p1910, %s28, 1
        %p1912 = scmp.lt.s32.totalorder %s1909, 7
        %s1913 = scalar_select %p1912, %s1909, 7
        %s1914 = smul.addr %s1911, 8
        %s1915 = sadd.s32 %s1913, %s1914
        %s1916 = smul.addr %s1915, 4
        %s1917 = scalar_lea.vmem %s8, %s1916
      $region72: #{tpu_custom_call.1} parent=67 // pred_fallthru
        _
      // Predicated region
      $region73: #{tpu_custom_call.1} parent=67 // pred_check
        %p1918 = pneg %p282
      $region74: #{tpu_custom_call.1} parent=67 // pred_check_branch
        %1920 = sbr.rel (%p1918) target = $region76
      $region75: #{tpu_custom_call.1} parent=67 // pred_region
        %s1921 = smul.u32 8, %s29
        %p1922 = scmp.lt.s32.totalorder %s28, 1
        %s1923 = scalar_select %p1922, %s28, 1
        %p1924 = scmp.lt.s32.totalorder %s1921, 7
        %s1925 = scalar_select %p1924, %s1921, 7
        %s1926 = smul.addr %s1923, 8
        %s1927 = sadd.s32 %s1925, %s1926
        %s1928 = smul.addr %s1927, 4
        %s1929 = scalar_lea.vmem %s9, %s1928
      $region76: #{tpu_custom_call.1} parent=67 // pred_fallthru
        _
      // Predicated region
      $region77: #{tpu_custom_call.1} parent=67 // pred_check
        %p1930 = pneg %p310
      $region78: #{tpu_custom_call.1} parent=67 // pred_check_branch
        %1932 = sbr.rel (%p1930) target = $region80
      $region79: #{tpu_custom_call.1} parent=67 // pred_region
        %s1933 = smul.u32 8, %s29
        %p1934 = scmp.lt.s32.totalorder %s28, 1
        %s1935 = scalar_select %p1934, %s28, 1
        %p1936 = scmp.lt.s32.totalorder %s1933, 7
        %s1937 = scalar_select %p1936, %s1933, 7
        %s1938 = smul.addr %s1935, 8
        %s1939 = sadd.s32 %s1937, %s1938
        %s1940 = smul.addr %s1939, 4
        %s1941 = scalar_lea.vmem %s10, %s1940
      $region80: #{tpu_custom_call.1} parent=67 // pred_fallthru
        _
    $region68: #{tpu_custom_call.1} parent=5 // pred_fallthru
      _
  $region6: #{tpu_custom_call.1} parent=0 // loop_footer
    %s21 = sadd.s32 1, %s17
  $region7: #{tpu_custom_call.1} parent=0 // loop_footer_branch
    %16 = sbr.rel target = $region3
  $region8: #{tpu_custom_call.1} parent=0 // loop_exit
    _

</llo_original>
